<compile_context>
chip_gen: v6e
topology: v6e:2x2x1
jax: 0.10.0
libtpu: 0.0.40
codegen_flags: <defaults>
</compile_context>

<pallas_src>
import math
from functools import partial

import jax
import jax.numpy as jnp
from jax.experimental import pallas as pl
from jax.experimental.pallas import tpu as pltpu

_EPS = 1e-5


def _ceil8(n):
    return ((n + 7) // 8) * 8


# ----------------------------------------------------------------------------
# Fused Pallas kernel: whole MSTCN block for NB batch elements.
# ----------------------------------------------------------------------------
def _mstcn_fused_kernel(x_ref, w1_ref, w2_ref, mps_ref, o_ref, hpad_ref, *,
                        nd, bcp, remp, ks, dils, L, V, P, NB):
    Wp = L + 2 * P                 # padded width of one batch segment
    W_out = NB * Wp - 2 * P        # "gapped" output width covering all segments
    n_relu_p = (nd + 1) * bcp      # rows that get ReLU after the 1x1 matmul
    rows_out = n_relu_p + remp     # padded output-row count
    center = (ks - 1) // 2

    # -- zero ONLY the temporal pad columns of the staging scratch ------------
    # (center is fully overwritten below; done every step -- not just step 0 --
    #  so megacore "parallel" splitting, where each core owns an uninitialised
    #  scratch copy, stays correct)
    zpad = jnp.zeros((n_relu_p, P), jnp.float32)
    for j in range(NB):
        hpad_ref[:, j * Wp:j * Wp + P] = zpad
        hpad_ref[:, j * Wp + P + L:(j + 1) * Wp] = zpad

    # -- every 1x1 conv of the block in a single MXU matmul -------------------
    # bias + BN shift are folded in through the ones row of x / shift column
    # of w1, so no broadcast add is needed.
    y = jnp.dot(w1_ref[...], x_ref[...], preferred_element_type=jnp.float32)
    h = jnp.maximum(y[0:n_relu_p, :], 0.0)      # dilated + maxpool branch inputs
    y_pw = y[n_relu_p:rows_out, :]              # plain 1x1 branch (no ReLU)
    y_res = y[rows_out:, :]                     # residual rows (+ folded BN2 shifts)

    # -- stage ReLU'd activations into the zero-padded VMEM scratch -----------
    # (zero padding is exact for the maxpool branch too, since h >= 0 post-ReLU)
    for j in range(NB):
        hpad_ref[:, j * Wp + P:j * Wp + P + L] = h[:, j * L:(j + 1) * L]

    # -- dilated temporal convs: ONE tap-stacked matmul per branch ------------
    # taps (ks*bcp, W_out) are statically shifted column slices of the scratch;
    # the MXU accumulates over the stacked contraction axis internally.
    for b in range(nd):
        d = dils[b]
        r0 = b * bcp
        taps = jnp.concatenate(
            [hpad_ref[r0:r0 + bcp,
                      P + (k - center) * d * V:P + (k - center) * d * V + W_out]
             for k in range(ks)], axis=0)
        conv = jnp.dot(w2_ref[r0:r0 + bcp, :], taps,
                       preferred_element_type=jnp.float32)
        for j in range(NB):
            seg = conv[:, j * Wp:j * Wp + L] + y_res[r0:r0 + bcp, j * L:(j + 1) * L]
            o_ref[r0:r0 + bcp, j * L:(j + 1) * L] = jnp.maximum(seg, 0.0)

    # -- maxpool(3,1) branch; its BN2 scale is the only affine that cannot be
    #    folded into a matmul (its BN2 shift rides in the residual rows) -------
    r0 = nd * bcp
    hc = hpad_ref[r0:r0 + bcp, P:P + W_out]
    hl = hpad_ref[r0:r0 + bcp, P - V:P - V + W_out]
    hr = hpad_ref[r0:r0 + bcp, P + V:P + V + W_out]
    m = jnp.maximum(jnp.maximum(hl, hc), hr) * mps_ref[...]
    for j in range(NB):
        seg = m[:, j * Wp:j * Wp + L] + y_res[r0:r0 + bcp, j * L:(j + 1) * L]
        o_ref[r0:r0 + bcp, j * L:(j + 1) * L] = jnp.maximum(seg, 0.0)

    # -- plain 1x1 branch (already computed by the batched matmul) ------------
    o_ref[n_relu_p:rows_out, :] = jnp.maximum(
        y_pw + y_res[n_relu_p:rows_out, :], 0.0)


# ----------------------------------------------------------------------------
# Host-side parameter folding (one-time glue on weights only).
# ----------------------------------------------------------------------------
def _fold(bias, gamma, beta, mean, var):
    s = gamma / jnp.sqrt(var + _EPS)
    return s, s * (bias - mean) + beta


def _prepare_fused_params(params, ks, cin):
    branches = params['branches']
    mp, pw, rp = params['maxbranch'], params['pwbranch'], params['residual']
    nd = len(branches)
    bc = branches[0]['w1'].shape[0]
    rem = pw['w1'].shape[0]
    cout = rp['w1'].shape[0]
    bcp, remp = _ceil8(bc), _ceil8(rem)
    cinp = _ceil8(cin + 1)                       # +1 ones row for bias folding
    n_relu_p = (nd + 1) * bcp
    rows_out = n_relu_p + remp
    c1p = n_relu_p + remp + rows_out

    w1 = jnp.zeros((c1p, cinp), jnp.float32)

    def put(w, row0, weight, shift):
        c = weight.shape[0]
        w = w.at[row0:row0 + c, :cin].set(weight.astype(jnp.float32))
        w = w.at[row0:row0 + c, cin].set(shift.astype(jnp.float32))
        return w

    # section A: ReLU'd branch-input 1x1 reduce convs (dilated + maxpool)
    for b, bp in enumerate(branches):
        s1, sh1 = _fold(bp['b1'], *bp['bn1'])
        w1 = put(w1, b * bcp, s1[:, None] * bp['w1'][:, :, 0, 0], sh1)
    s1m, sh1m = _fold(mp['b1'], *mp['bn1'])
    w1 = put(w1, nd * bcp, s1m[:, None] * mp['w1'][:, :, 0, 0], sh1m)

    # section B: plain 1x1 branch (BN folded)
    s_pw, sh_pw = _fold(pw['b1'], *pw['bn1'])
    w1 = put(w1, n_relu_p, s_pw[:, None] * pw['w1'][:, :, 0, 0], sh_pw)

    # section C: residual 1x1 conv in the padded OUTPUT row layout, with the
    # dilated / maxpool branches' BN2 shifts folded into its shift column.
    s_r, sh_r = _fold(rp['b1'], *rp['bn1'])
    w_r = s_r[:, None] * rp['w1'][:, :, 0, 0]                    # (cout, cin)
    for b, bp in enumerate(branches):
        _, sh2 = _fold(bp['b2'], *bp['bn2'])
        ch0 = b * bc
        w1 = put(w1, rows_out + b * bcp, w_r[ch0:ch0 + bc],
                 sh_r[ch0:ch0 + bc] + sh2)
    g2, be2, mu2, va2 = mp['bn2']
    mp_scale = g2 / jnp.sqrt(va2 + _EPS)
    mp_shift = be2 - mp_scale * mu2
    ch0 = nd * bc
    w1 = put(w1, rows_out + nd * bcp, w_r[ch0:ch0 + bc],
             sh_r[ch0:ch0 + bc] + mp_shift)
    ch0 = (nd + 1) * bc
    w1 = put(w1, rows_out + n_relu_p, w_r[ch0:ch0 + rem], sh_r[ch0:ch0 + rem])

    # tap-stacked dilated-conv weights (BN2 scale folded):
    #   branch b rows [b*bcp, b*bcp+bc), tap k columns [k*bcp, k*bcp+bc)
    w2 = jnp.zeros((nd * bcp, ks * bcp), jnp.float32)
    for b, bp in enumerate(branches):
        s2, _ = _fold(bp['b2'], *bp['bn2'])
        wb = s2[:, None, None] * bp['w2'][:, :, :, 0]            # (bc, bc, ks)
        for k in range(ks):
            w2 = w2.at[b * bcp:b * bcp + bc, k * bcp:k * bcp + bc].set(wb[:, :, k])

    mps = jnp.zeros((bcp, 1), jnp.float32).at[:bc, 0].set(mp_scale)
    return w1, w2, mps, bc, rem, cout, bcp, remp


# ----------------------------------------------------------------------------
# Forward (one fused pallas_call)
# ----------------------------------------------------------------------------
def mstcn_forward_pallas(x, params, dilations, ks, *, max_lanes=4096):
    assert ks % 2 == 1, "odd temporal kernel size assumed"
    N, Cin, T, V = x.shape
    L = T * V
    nd = len(dilations)
    w1, w2, mps, bc, rem, cout, bcp, remp = _prepare_fused_params(params, ks, Cin)
    c1p, cinp = w1.shape
    n_relu_p = (nd + 1) * bcp
    rows_out = n_relu_p + remp

    # temporal zero-pad (frames): exactly the largest tap / pool shift.
    max_shift = max(1, max(dilations) * ((ks - 1) // 2))
    P = max_shift * V
    Wp = L + 2 * P

    # fold several batch elements into one grid step to amortize per-step
    # overhead (largest divisor of N whose lane extent / scratch stays modest).
    NB = 1
    for nb in range(1, N + 1):
        if N % nb:
            continue
        if nb * L <= max_lanes and n_relu_p * nb * Wp * 4 <= (8 << 20):
            NB = nb
    NSTEP = N // NB

    # host-side layout plumbing: (N,Cin,T,V) -> (NSTEP, CinP, NB*L) with a
    # ones row (folded bias/BN shift) and zero rows padding Cin+1 up to 8.
    x2 = x.reshape(N, Cin, L).astype(jnp.float32)
    ones = jnp.ones((N, 1, L), jnp.float32)
    zrow = jnp.zeros((N, cinp - Cin - 1, L), jnp.float32)
    xa = jnp.concatenate([x2, ones, zrow], axis=1)               # (N, CinP, L)
    xa = xa.reshape(NSTEP, NB, cinp, L).transpose(0, 2, 1, 3)
    xa = xa.reshape(NSTEP, cinp, NB * L)

    kernel = partial(_mstcn_fused_kernel, nd=nd, bcp=bcp, remp=remp, ks=ks,
                     dils=tuple(dilations), L=L, V=V, P=P, NB=NB)
    out = pl.pallas_call(
        kernel,
        out_shape=jax.ShapeDtypeStruct((NSTEP, rows_out, NB * L), jnp.float32),
        grid=(NSTEP,),
        in_specs=[
            pl.BlockSpec((None, cinp, NB * L), lambda n: (n, 0, 0)),   # x (+ones)
            pl.BlockSpec((c1p, cinp), lambda n: (0, 0)),               # all 1x1 W
            pl.BlockSpec((nd * bcp, ks * bcp), lambda n: (0, 0)),      # temporal W
            pl.BlockSpec((bcp, 1), lambda n: (0, 0)),                  # mp BN2 scale
        ],
        out_specs=pl.BlockSpec((None, rows_out, NB * L), lambda n: (n, 0, 0)),
        scratch_shapes=[pltpu.VMEM((n_relu_p, NB * Wp), jnp.float32)],
        compiler_params=pltpu.CompilerParams(dimension_semantics=("parallel",)),
    )(xa, w1, w2, mps)

    # undo layout plumbing and drop the sublane-padding rows.
    out = out.reshape(NSTEP, rows_out, NB, L).transpose(0, 2, 1, 3)
    out = out.reshape(N, rows_out, T, V)
    row_idx = []
    for b in range(nd + 1):                       # dilated blocks + maxpool block
        row_idx.extend(range(b * bcp, b * bcp + bc))
    row_idx.extend(range(n_relu_p, n_relu_p + rem))
    out = out[:, jnp.asarray(row_idx, jnp.int32), :, :]
    return out


# ----------------------------------------------------------------------------
# Parameter setup (deterministic, in-script)
# ----------------------------------------------------------------------------
def init_params(key, cin, cout, dilations, ks):
    nb = len(dilations) + 2
    bc = cout // nb
    rem = cout - bc * (nb - 1)
    keys = iter(jax.random.split(key, 128))
    nk = lambda: next(keys)

    def bn_params(c):
        return (jax.random.uniform(nk(), (c,), minval=0.5, maxval=1.5),
                0.1 * jax.random.normal(nk(), (c,)),
                0.1 * jax.random.normal(nk(), (c,)),
                jax.random.uniform(nk(), (c,), minval=0.5, maxval=1.5))

    def conv_w(co, ci, kh):
        return (1.0 / math.sqrt(ci * kh)) * jax.random.normal(nk(), (co, ci, kh, 1))

    def conv_b(co):
        return 0.1 * jax.random.normal(nk(), (co,))

    branches = []
    for d in dilations:
        pad = (ks + (ks - 1) * (d - 1) - 1) // 2
        branches.append(dict(
            w1=conv_w(bc, cin, 1), b1=conv_b(bc), bn1=bn_params(bc),
            w2=conv_w(bc, bc, ks), b2=conv_b(bc), bn2=bn_params(bc),
            dil=d, ks=ks, pad=pad))
    maxbranch = dict(w1=conv_w(bc, cin, 1), b1=conv_b(bc),
                     bn1=bn_params(bc), bn2=bn_params(bc))
    pwbranch = dict(w1=conv_w(rem, cin, 1), b1=conv_b(rem), bn1=bn_params(rem))
    residual = dict(w1=conv_w(cout, cin, 1), b1=conv_b(cout), bn1=bn_params(cout))
    return dict(branches=branches, maxbranch=maxbranch,
                pwbranch=pwbranch, residual=residual)


# ----------------------------------------------------------------------------
# Pure-JAX reference (for correctness check only)
# ----------------------------------------------------------------------------
def mstcn_forward_ref(x, params):
    def bn(h, p):
        g, b, m, v = p
        return (h - m[None, :, None, None]) / jnp.sqrt(v[None, :, None, None] + _EPS) \
            * g[None, :, None, None] + b[None, :, None, None]

    def conv(h, w, b, dil=1, pad=0):
        o = jax.lax.conv_general_dilated(
            h, w, window_strides=(1, 1), padding=[(pad, pad), (0, 0)],
            rhs_dilation=(dil, 1), dimension_numbers=('NCHW', 'OIHW', 'NCHW'))
        return o + b[None, :, None, None]

    outs = []
    for bp in params['branches']:
        h = jax.nn.relu(bn(conv(x, bp['w1'], bp['b1']), bp['bn1']))
        h = bn(conv(h, bp['w2'], bp['b2'], dil=bp['dil'], pad=bp['pad']), bp['bn2'])
        outs.append(h)
    mp = params['maxbranch']
    h = jax.nn.relu(bn(conv(x, mp['w1'], mp['b1']), mp['bn1']))
    h = jax.lax.reduce_window(h, -jnp.inf, jax.lax.max, (1, 1, 3, 1), (1, 1, 1, 1),
                              [(0, 0), (0, 0), (1, 1), (0, 0)])
    outs.append(bn(h, mp['bn2']))
    pw = params['pwbranch']
    outs.append(bn(conv(x, pw['w1'], pw['b1']), pw['bn1']))
    out = jnp.concatenate(outs, axis=1)
    rp = params['residual']
    res = bn(conv(x, rp['w1'], rp['b1']), rp['bn1'])
    return jax.nn.relu(out + res)


# ----------------------------------------------------------------------------
if __name__ == "__main__":
    key = jax.random.PRNGKey(0)
    kx, kp = jax.random.split(key)

    N, Cin, T, V = 2, 4, 16, 16
    Cout = 12                      # 6 branches -> branch_channels=2, remainder=2
    dilations = [1, 2, 3, 4]
    ks = 3

    x = jax.random.normal(kx, (N, Cin, T, V), dtype=jnp.float32)
    params = init_params(kp, Cin, Cout, dilations, ks)

    out = mstcn_forward_pallas(x, params, dilations, ks)
    out = jax.block_until_ready(out)

    ref = mstcn_forward_ref(x, params)
    assert out.shape == (N, Cout, T, V), out.shape
    assert bool(jnp.allclose(out, ref, atol=1e-4, rtol=1e-4)), \
        float(jnp.max(jnp.abs(out - ref)))

    print("KERNEL_OK")
</pallas_src>

<mosaic_0001>
module attributes {stable_mosaic.version = 11 : i64} {
  func.func @_mstcn_fused_kernel(%arg0: i32, %arg1: memref<1x8x512xf32, #tpu.memory_space<vmem>>, %arg2: memref<96x8xf32, #tpu.memory_space<vmem>>, %arg3: memref<32x24xf32, #tpu.memory_space<vmem>>, %arg4: memref<8x1xf32, #tpu.memory_space<vmem>>, %arg5: memref<1x48x512xf32, #tpu.memory_space<vmem>>, %arg6: memref<40x768xf32, #tpu.memory_space<vmem>>) attributes {dimension_semantics = [#tpu.dimension_semantics<parallel>], iteration_bounds = array<i64: 1>, scalar_prefetch = 0 : i64, scratch_operands = 1 : i64, tpu.core_type = #tpu.core_type<tc>, window_params = [{transform_indices = @transform_0, window_bounds = array<i64: 1, 8, 512>}, {pipeline_mode = #tpu.pipeline_mode<synchronous>, transform_indices = @transform_1, window_bounds = array<i64: 96, 8>}, {pipeline_mode = #tpu.pipeline_mode<synchronous>, transform_indices = @transform_2, window_bounds = array<i64: 32, 24>}, {pipeline_mode = #tpu.pipeline_mode<synchronous>, transform_indices = @transform_3, window_bounds = array<i64: 8, 1>}, {transform_indices = @transform_4, window_bounds = array<i64: 1, 48, 512>}]} {
    %cst = arith.constant 0.000000e+00 : f32
    %0 = vector.broadcast %cst : f32 to vector<40x64xf32>
    %c0 = arith.constant 0 : index
    %c0_0 = arith.constant 0 : index
    %1 = vector.load %arg6[%c0, %c0_0] : memref<40x768xf32, #tpu.memory_space<vmem>>, vector<40x64xf32>
    tpu.vector_store %arg6[%c0, %c0_0], %0 {strides = array<i32>} : memref<40x768xf32, #tpu.memory_space<vmem>>, vector<40x64xf32>,
    %c0_1 = arith.constant 0 : index
    %c320 = arith.constant 320 : index
    %2 = vector.load %arg6[%c0_1, %c320] : memref<40x768xf32, #tpu.memory_space<vmem>>, vector<40x64xf32>
    tpu.vector_store %arg6[%c0_1, %c320], %0 {strides = array<i32>} : memref<40x768xf32, #tpu.memory_space<vmem>>, vector<40x64xf32>,
    %c0_2 = arith.constant 0 : index
    %c384 = arith.constant 384 : index
    %3 = vector.load %arg6[%c0_2, %c384] : memref<40x768xf32, #tpu.memory_space<vmem>>, vector<40x64xf32>
    tpu.vector_store %arg6[%c0_2, %c384], %0 {strides = array<i32>} : memref<40x768xf32, #tpu.memory_space<vmem>>, vector<40x64xf32>,
    %c0_3 = arith.constant 0 : index
    %c704 = arith.constant 704 : index
    %4 = vector.load %arg6[%c0_3, %c704] : memref<40x768xf32, #tpu.memory_space<vmem>>, vector<40x64xf32>
    tpu.vector_store %arg6[%c0_3, %c704], %0 {strides = array<i32>} : memref<40x768xf32, #tpu.memory_space<vmem>>, vector<40x64xf32>,
    %c0_4 = arith.constant 0 : index
    %c0_5 = arith.constant 0 : index
    %5 = vector.load %arg2[%c0_4, %c0_5] : memref<96x8xf32, #tpu.memory_space<vmem>>, vector<96x8xf32>
    %c0_6 = arith.constant 0 : index
    %c0_7 = arith.constant 0 : index
    %c0_8 = arith.constant 0 : index
    %6 = vector.load %arg1[%c0_6, %c0_7, %c0_8] : memref<1x8x512xf32, #tpu.memory_space<vmem>>, vector<1x8x512xf32>
    %7 = vector.shape_cast %6 : vector<1x8x512xf32> to vector<8x512xf32>
    %cst_9 = arith.constant dense<0.000000e+00> : vector<96x512xf32>
    %8 = tpu.matmul %5, %7, %cst_9 {dimension_numbers = #tpu.dot_dimension_numbers<[1], [0], [0], [1], [0, 0, 1, 1], [], []>} : vector<96x8xf32>, vector<8x512xf32>, vector<96x512xf32> -> vector<96x512xf32>
    %9 = vector.extract_strided_slice %8 {offsets = [0, 0], sizes = [40, 512], strides = [1, 1]} : vector<96x512xf32> to vector<40x512xf32>
    %cst_10 = arith.constant 0.000000e+00 : f32
    %10 = vector.broadcast %cst_10 : f32 to vector<40x512xf32>
    %11 = arith.maximumf %9, %10 : vector<40x512xf32>
    %12 = vector.extract_strided_slice %8 {offsets = [40, 0], sizes = [8, 512], strides = [1, 1]} : vector<96x512xf32> to vector<8x512xf32>
    %13 = vector.extract_strided_slice %8 {offsets = [48, 0], sizes = [48, 512], strides = [1, 1]} : vector<96x512xf32> to vector<48x512xf32>
    %14 = vector.extract_strided_slice %11 {offsets = [0, 0], sizes = [40, 256], strides = [1, 1]} : vector<40x512xf32> to vector<40x256xf32>
    %c0_11 = arith.constant 0 : index
    %c64 = arith.constant 64 : index
    %15 = vector.load %arg6[%c0_11, %c64] : memref<40x768xf32, #tpu.memory_space<vmem>>, vector<40x256xf32>
    tpu.vector_store %arg6[%c0_11, %c64], %14 {strides = array<i32>} : memref<40x768xf32, #tpu.memory_space<vmem>>, vector<40x256xf32>,
    %16 = vector.extract_strided_slice %11 {offsets = [0, 256], sizes = [40, 256], strides = [1, 1]} : vector<40x512xf32> to vector<40x256xf32>
    %c0_12 = arith.constant 0 : index
    %c448 = arith.constant 448 : index
    %17 = vector.load %arg6[%c0_12, %c448] : memref<40x768xf32, #tpu.memory_space<vmem>>, vector<40x256xf32>
    tpu.vector_store %arg6[%c0_12, %c448], %16 {strides = array<i32>} : memref<40x768xf32, #tpu.memory_space<vmem>>, vector<40x256xf32>,
    %c0_13 = arith.constant 0 : index
    %c48 = arith.constant 48 : index
    %18 = vector.load %arg6[%c0_13, %c48] : memref<40x768xf32, #tpu.memory_space<vmem>>, vector<8x640xf32>
    %c0_14 = arith.constant 0 : index
    %c64_15 = arith.constant 64 : index
    %19 = vector.load %arg6[%c0_14, %c64_15] : memref<40x768xf32, #tpu.memory_space<vmem>>, vector<8x640xf32>
    %c0_16 = arith.constant 0 : index
    %c80 = arith.constant 80 : index
    %20 = vector.load %arg6[%c0_16, %c80] : memref<40x768xf32, #tpu.memory_space<vmem>>, vector<8x640xf32>
    %21 = tpu.concatenate %18, %19, %20 in 0 : vector<8x640xf32>, vector<8x640xf32>, vector<8x640xf32> -> vector<24x640xf32>
    %c0_17 = arith.constant 0 : index
    %c0_18 = arith.constant 0 : index
    %22 = vector.load %arg3[%c0_17, %c0_18] : memref<32x24xf32, #tpu.memory_space<vmem>>, vector<8x24xf32>
    %cst_19 = arith.constant dense<0.000000e+00> : vector<8x640xf32>
    %23 = tpu.matmul %22, %21, %cst_19 {dimension_numbers = #tpu.dot_dimension_numbers<[1], [0], [0], [1], [0, 0, 1, 1], [], []>} : vector<8x24xf32>, vector<24x640xf32>, vector<8x640xf32> -> vector<8x640xf32>
    %24 = vector.extract_strided_slice %23 {offsets = [0, 0], sizes = [8, 256], strides = [1, 1]} : vector<8x640xf32> to vector<8x256xf32>
    %25 = vector.extract_strided_slice %13 {offsets = [0, 0], sizes = [8, 256], strides = [1, 1]} : vector<48x512xf32> to vector<8x256xf32>
    %26 = arith.addf %24, %25 : vector<8x256xf32>
    %cst_20 = arith.constant 0.000000e+00 : f32
    %27 = vector.broadcast %cst_20 : f32 to vector<8x256xf32>
    %28 = arith.maximumf %26, %27 : vector<8x256xf32>
    %c0_21 = arith.constant 0 : index
    %c0_22 = arith.constant 0 : index
    %c0_23 = arith.constant 0 : index
    %29 = vector.load %arg5[%c0_21, %c0_22, %c0_23] : memref<1x48x512xf32, #tpu.memory_space<vmem>>, vector<1x8x256xf32>
    %30 = vector.shape_cast %29 : vector<1x8x256xf32> to vector<8x256xf32>
    %31 = vector.shape_cast %28 : vector<8x256xf32> to vector<1x8x256xf32>
    tpu.vector_store %arg5[%c0_21, %c0_22, %c0_23], %31 {strides = array<i32>} : memref<1x48x512xf32, #tpu.memory_space<vmem>>, vector<1x8x256xf32>,
    %32 = vector.extract_strided_slice %23 {offsets = [0, 384], sizes = [8, 256], strides = [1, 1]} : vector<8x640xf32> to vector<8x256xf32>
    %33 = vector.extract_strided_slice %13 {offsets = [0, 256], sizes = [8, 256], strides = [1, 1]} : vector<48x512xf32> to vector<8x256xf32>
    %34 = arith.addf %32, %33 : vector<8x256xf32>
    %cst_24 = arith.constant 0.000000e+00 : f32
    %35 = vector.broadcast %cst_24 : f32 to vector<8x256xf32>
    %36 = arith.maximumf %34, %35 : vector<8x256xf32>
    %c0_25 = arith.constant 0 : index
    %c0_26 = arith.constant 0 : index
    %c256 = arith.constant 256 : index
    %37 = vector.load %arg5[%c0_25, %c0_26, %c256] : memref<1x48x512xf32, #tpu.memory_space<vmem>>, vector<1x8x256xf32>
    %38 = vector.shape_cast %37 : vector<1x8x256xf32> to vector<8x256xf32>
    %39 = vector.shape_cast %36 : vector<8x256xf32> to vector<1x8x256xf32>
    tpu.vector_store %arg5[%c0_25, %c0_26, %c256], %39 {strides = array<i32>} : memref<1x48x512xf32, #tpu.memory_space<vmem>>, vector<1x8x256xf32>,
    %c8 = arith.constant 8 : index
    %c32 = arith.constant 32 : index
    %40 = vector.load %arg6[%c8, %c32] : memref<40x768xf32, #tpu.memory_space<vmem>>, vector<8x640xf32>
    %c8_27 = arith.constant 8 : index
    %c64_28 = arith.constant 64 : index
    %41 = vector.load %arg6[%c8_27, %c64_28] : memref<40x768xf32, #tpu.memory_space<vmem>>, vector<8x640xf32>
    %c8_29 = arith.constant 8 : index
    %c96 = arith.constant 96 : index
    %42 = vector.load %arg6[%c8_29, %c96] : memref<40x768xf32, #tpu.memory_space<vmem>>, vector<8x640xf32>
    %43 = tpu.concatenate %40, %41, %42 in 0 : vector<8x640xf32>, vector<8x640xf32>, vector<8x640xf32> -> vector<24x640xf32>
    %c8_30 = arith.constant 8 : index
    %c0_31 = arith.constant 0 : index
    %44 = vector.load %arg3[%c8_30, %c0_31] : memref<32x24xf32, #tpu.memory_space<vmem>>, vector<8x24xf32>
    %cst_32 = arith.constant dense<0.000000e+00> : vector<8x640xf32>
    %45 = tpu.matmul %44, %43, %cst_32 {dimension_numbers = #tpu.dot_dimension_numbers<[1], [0], [0], [1], [0, 0, 1, 1], [], []>} : vector<8x24xf32>, vector<24x640xf32>, vector<8x640xf32> -> vector<8x640xf32>
    %46 = vector.extract_strided_slice %45 {offsets = [0, 0], sizes = [8, 256], strides = [1, 1]} : vector<8x640xf32> to vector<8x256xf32>
    %47 = vector.extract_strided_slice %13 {offsets = [8, 0], sizes = [8, 256], strides = [1, 1]} : vector<48x512xf32> to vector<8x256xf32>
    %48 = arith.addf %46, %47 : vector<8x256xf32>
    %cst_33 = arith.constant 0.000000e+00 : f32
    %49 = vector.broadcast %cst_33 : f32 to vector<8x256xf32>
    %50 = arith.maximumf %48, %49 : vector<8x256xf32>
    %c0_34 = arith.constant 0 : index
    %c8_35 = arith.constant 8 : index
    %c0_36 = arith.constant 0 : index
    %51 = vector.load %arg5[%c0_34, %c8_35, %c0_36] : memref<1x48x512xf32, #tpu.memory_space<vmem>>, vector<1x8x256xf32>
    %52 = vector.shape_cast %51 : vector<1x8x256xf32> to vector<8x256xf32>
    %53 = vector.shape_cast %50 : vector<8x256xf32> to vector<1x8x256xf32>
    tpu.vector_store %arg5[%c0_34, %c8_35, %c0_36], %53 {strides = array<i32>} : memref<1x48x512xf32, #tpu.memory_space<vmem>>, vector<1x8x256xf32>,
    %54 = vector.extract_strided_slice %45 {offsets = [0, 384], sizes = [8, 256], strides = [1, 1]} : vector<8x640xf32> to vector<8x256xf32>
    %55 = vector.extract_strided_slice %13 {offsets = [8, 256], sizes = [8, 256], strides = [1, 1]} : vector<48x512xf32> to vector<8x256xf32>
    %56 = arith.addf %54, %55 : vector<8x256xf32>
    %cst_37 = arith.constant 0.000000e+00 : f32
    %57 = vector.broadcast %cst_37 : f32 to vector<8x256xf32>
    %58 = arith.maximumf %56, %57 : vector<8x256xf32>
    %c0_38 = arith.constant 0 : index
    %c8_39 = arith.constant 8 : index
    %c256_40 = arith.constant 256 : index
    %59 = vector.load %arg5[%c0_38, %c8_39, %c256_40] : memref<1x48x512xf32, #tpu.memory_space<vmem>>, vector<1x8x256xf32>
    %60 = vector.shape_cast %59 : vector<1x8x256xf32> to vector<8x256xf32>
    %61 = vector.shape_cast %58 : vector<8x256xf32> to vector<1x8x256xf32>
    tpu.vector_store %arg5[%c0_38, %c8_39, %c256_40], %61 {strides = array<i32>} : memref<1x48x512xf32, #tpu.memory_space<vmem>>, vector<1x8x256xf32>,
    %c16 = arith.constant 16 : index
    %c16_41 = arith.constant 16 : index
    %62 = vector.load %arg6[%c16, %c16_41] : memref<40x768xf32, #tpu.memory_space<vmem>>, vector<8x640xf32>
    %c16_42 = arith.constant 16 : index
    %c64_43 = arith.constant 64 : index
    %63 = vector.load %arg6[%c16_42, %c64_43] : memref<40x768xf32, #tpu.memory_space<vmem>>, vector<8x640xf32>
    %c16_44 = arith.constant 16 : index
    %c112 = arith.constant 112 : index
    %64 = vector.load %arg6[%c16_44, %c112] : memref<40x768xf32, #tpu.memory_space<vmem>>, vector<8x640xf32>
    %65 = tpu.concatenate %62, %63, %64 in 0 : vector<8x640xf32>, vector<8x640xf32>, vector<8x640xf32> -> vector<24x640xf32>
    %c16_45 = arith.constant 16 : index
    %c0_46 = arith.constant 0 : index
    %66 = vector.load %arg3[%c16_45, %c0_46] : memref<32x24xf32, #tpu.memory_space<vmem>>, vector<8x24xf32>
    %cst_47 = arith.constant dense<0.000000e+00> : vector<8x640xf32>
    %67 = tpu.matmul %66, %65, %cst_47 {dimension_numbers = #tpu.dot_dimension_numbers<[1], [0], [0], [1], [0, 0, 1, 1], [], []>} : vector<8x24xf32>, vector<24x640xf32>, vector<8x640xf32> -> vector<8x640xf32>
    %68 = vector.extract_strided_slice %67 {offsets = [0, 0], sizes = [8, 256], strides = [1, 1]} : vector<8x640xf32> to vector<8x256xf32>
    %69 = vector.extract_strided_slice %13 {offsets = [16, 0], sizes = [8, 256], strides = [1, 1]} : vector<48x512xf32> to vector<8x256xf32>
    %70 = arith.addf %68, %69 : vector<8x256xf32>
    %cst_48 = arith.constant 0.000000e+00 : f32
    %71 = vector.broadcast %cst_48 : f32 to vector<8x256xf32>
    %72 = arith.maximumf %70, %71 : vector<8x256xf32>
    %c0_49 = arith.constant 0 : index
    %c16_50 = arith.constant 16 : index
    %c0_51 = arith.constant 0 : index
    %73 = vector.load %arg5[%c0_49, %c16_50, %c0_51] : memref<1x48x512xf32, #tpu.memory_space<vmem>>, vector<1x8x256xf32>
    %74 = vector.shape_cast %73 : vector<1x8x256xf32> to vector<8x256xf32>
    %75 = vector.shape_cast %72 : vector<8x256xf32> to vector<1x8x256xf32>
    tpu.vector_store %arg5[%c0_49, %c16_50, %c0_51], %75 {strides = array<i32>} : memref<1x48x512xf32, #tpu.memory_space<vmem>>, vector<1x8x256xf32>,
    %76 = vector.extract_strided_slice %67 {offsets = [0, 384], sizes = [8, 256], strides = [1, 1]} : vector<8x640xf32> to vector<8x256xf32>
    %77 = vector.extract_strided_slice %13 {offsets = [16, 256], sizes = [8, 256], strides = [1, 1]} : vector<48x512xf32> to vector<8x256xf32>
    %78 = arith.addf %76, %77 : vector<8x256xf32>
    %cst_52 = arith.constant 0.000000e+00 : f32
    %79 = vector.broadcast %cst_52 : f32 to vector<8x256xf32>
    %80 = arith.maximumf %78, %79 : vector<8x256xf32>
    %c0_53 = arith.constant 0 : index
    %c16_54 = arith.constant 16 : index
    %c256_55 = arith.constant 256 : index
    %81 = vector.load %arg5[%c0_53, %c16_54, %c256_55] : memref<1x48x512xf32, #tpu.memory_space<vmem>>, vector<1x8x256xf32>
    %82 = vector.shape_cast %81 : vector<1x8x256xf32> to vector<8x256xf32>
    %83 = vector.shape_cast %80 : vector<8x256xf32> to vector<1x8x256xf32>
    tpu.vector_store %arg5[%c0_53, %c16_54, %c256_55], %83 {strides = array<i32>} : memref<1x48x512xf32, #tpu.memory_space<vmem>>, vector<1x8x256xf32>,
    %c24 = arith.constant 24 : index
    %c0_56 = arith.constant 0 : index
    %84 = vector.load %arg6[%c24, %c0_56] : memref<40x768xf32, #tpu.memory_space<vmem>>, vector<8x640xf32>
    %c24_57 = arith.constant 24 : index
    %c64_58 = arith.constant 64 : index
    %85 = vector.load %arg6[%c24_57, %c64_58] : memref<40x768xf32, #tpu.memory_space<vmem>>, vector<8x640xf32>
    %c24_59 = arith.constant 24 : index
    %c128 = arith.constant 128 : index
    %86 = vector.load %arg6[%c24_59, %c128] : memref<40x768xf32, #tpu.memory_space<vmem>>, vector<8x640xf32>
    %87 = tpu.concatenate %84, %85, %86 in 0 : vector<8x640xf32>, vector<8x640xf32>, vector<8x640xf32> -> vector<24x640xf32>
    %c24_60 = arith.constant 24 : index
    %c0_61 = arith.constant 0 : index
    %88 = vector.load %arg3[%c24_60, %c0_61] : memref<32x24xf32, #tpu.memory_space<vmem>>, vector<8x24xf32>
    %cst_62 = arith.constant dense<0.000000e+00> : vector<8x640xf32>
    %89 = tpu.matmul %88, %87, %cst_62 {dimension_numbers = #tpu.dot_dimension_numbers<[1], [0], [0], [1], [0, 0, 1, 1], [], []>} : vector<8x24xf32>, vector<24x640xf32>, vector<8x640xf32> -> vector<8x640xf32>
    %90 = vector.extract_strided_slice %89 {offsets = [0, 0], sizes = [8, 256], strides = [1, 1]} : vector<8x640xf32> to vector<8x256xf32>
    %91 = vector.extract_strided_slice %13 {offsets = [24, 0], sizes = [8, 256], strides = [1, 1]} : vector<48x512xf32> to vector<8x256xf32>
    %92 = arith.addf %90, %91 : vector<8x256xf32>
    %cst_63 = arith.constant 0.000000e+00 : f32
    %93 = vector.broadcast %cst_63 : f32 to vector<8x256xf32>
    %94 = arith.maximumf %92, %93 : vector<8x256xf32>
    %c0_64 = arith.constant 0 : index
    %c24_65 = arith.constant 24 : index
    %c0_66 = arith.constant 0 : index
    %95 = vector.load %arg5[%c0_64, %c24_65, %c0_66] : memref<1x48x512xf32, #tpu.memory_space<vmem>>, vector<1x8x256xf32>
    %96 = vector.shape_cast %95 : vector<1x8x256xf32> to vector<8x256xf32>
    %97 = vector.shape_cast %94 : vector<8x256xf32> to vector<1x8x256xf32>
    tpu.vector_store %arg5[%c0_64, %c24_65, %c0_66], %97 {strides = array<i32>} : memref<1x48x512xf32, #tpu.memory_space<vmem>>, vector<1x8x256xf32>,
    %98 = vector.extract_strided_slice %89 {offsets = [0, 384], sizes = [8, 256], strides = [1, 1]} : vector<8x640xf32> to vector<8x256xf32>
    %99 = vector.extract_strided_slice %13 {offsets = [24, 256], sizes = [8, 256], strides = [1, 1]} : vector<48x512xf32> to vector<8x256xf32>
    %100 = arith.addf %98, %99 : vector<8x256xf32>
    %cst_67 = arith.constant 0.000000e+00 : f32
    %101 = vector.broadcast %cst_67 : f32 to vector<8x256xf32>
    %102 = arith.maximumf %100, %101 : vector<8x256xf32>
    %c0_68 = arith.constant 0 : index
    %c24_69 = arith.constant 24 : index
    %c256_70 = arith.constant 256 : index
    %103 = vector.load %arg5[%c0_68, %c24_69, %c256_70] : memref<1x48x512xf32, #tpu.memory_space<vmem>>, vector<1x8x256xf32>
    %104 = vector.shape_cast %103 : vector<1x8x256xf32> to vector<8x256xf32>
    %105 = vector.shape_cast %102 : vector<8x256xf32> to vector<1x8x256xf32>
    tpu.vector_store %arg5[%c0_68, %c24_69, %c256_70], %105 {strides = array<i32>} : memref<1x48x512xf32, #tpu.memory_space<vmem>>, vector<1x8x256xf32>,
    %c32_71 = arith.constant 32 : index
    %c64_72 = arith.constant 64 : index
    %106 = vector.load %arg6[%c32_71, %c64_72] : memref<40x768xf32, #tpu.memory_space<vmem>>, vector<8x640xf32>
    %c32_73 = arith.constant 32 : index
    %c48_74 = arith.constant 48 : index
    %107 = vector.load %arg6[%c32_73, %c48_74] : memref<40x768xf32, #tpu.memory_space<vmem>>, vector<8x640xf32>
    %c32_75 = arith.constant 32 : index
    %c80_76 = arith.constant 80 : index
    %108 = vector.load %arg6[%c32_75, %c80_76] : memref<40x768xf32, #tpu.memory_space<vmem>>, vector<8x640xf32>
    %109 = arith.maximumf %107, %106 : vector<8x640xf32>
    %110 = arith.maximumf %109, %108 : vector<8x640xf32>
    %c0_77 = arith.constant 0 : index
    %c0_78 = arith.constant 0 : index
    %111 = vector.load %arg4[%c0_77, %c0_78] : memref<8x1xf32, #tpu.memory_space<vmem>>, vector<8x1xf32>
    %112 = vector.broadcast %111 : vector<8x1xf32> to vector<8x640xf32>
    %113 = arith.mulf %110, %112 : vector<8x640xf32>
    %114 = vector.extract_strided_slice %113 {offsets = [0, 0], sizes = [8, 256], strides = [1, 1]} : vector<8x640xf32> to vector<8x256xf32>
    %115 = vector.extract_strided_slice %13 {offsets = [32, 0], sizes = [8, 256], strides = [1, 1]} : vector<48x512xf32> to vector<8x256xf32>
    %116 = arith.addf %114, %115 : vector<8x256xf32>
    %cst_79 = arith.constant 0.000000e+00 : f32
    %117 = vector.broadcast %cst_79 : f32 to vector<8x256xf32>
    %118 = arith.maximumf %116, %117 : vector<8x256xf32>
    %c0_80 = arith.constant 0 : index
    %c32_81 = arith.constant 32 : index
    %c0_82 = arith.constant 0 : index
    %119 = vector.load %arg5[%c0_80, %c32_81, %c0_82] : memref<1x48x512xf32, #tpu.memory_space<vmem>>, vector<1x8x256xf32>
    %120 = vector.shape_cast %119 : vector<1x8x256xf32> to vector<8x256xf32>
    %121 = vector.shape_cast %118 : vector<8x256xf32> to vector<1x8x256xf32>
    tpu.vector_store %arg5[%c0_80, %c32_81, %c0_82], %121 {strides = array<i32>} : memref<1x48x512xf32, #tpu.memory_space<vmem>>, vector<1x8x256xf32>,
    %122 = vector.extract_strided_slice %113 {offsets = [0, 384], sizes = [8, 256], strides = [1, 1]} : vector<8x640xf32> to vector<8x256xf32>
    %123 = vector.extract_strided_slice %13 {offsets = [32, 256], sizes = [8, 256], strides = [1, 1]} : vector<48x512xf32> to vector<8x256xf32>
    %124 = arith.addf %122, %123 : vector<8x256xf32>
    %cst_83 = arith.constant 0.000000e+00 : f32
    %125 = vector.broadcast %cst_83 : f32 to vector<8x256xf32>
    %126 = arith.maximumf %124, %125 : vector<8x256xf32>
    %c0_84 = arith.constant 0 : index
    %c32_85 = arith.constant 32 : index
    %c256_86 = arith.constant 256 : index
    %127 = vector.load %arg5[%c0_84, %c32_85, %c256_86] : memref<1x48x512xf32, #tpu.memory_space<vmem>>, vector<1x8x256xf32>
    %128 = vector.shape_cast %127 : vector<1x8x256xf32> to vector<8x256xf32>
    %129 = vector.shape_cast %126 : vector<8x256xf32> to vector<1x8x256xf32>
    tpu.vector_store %arg5[%c0_84, %c32_85, %c256_86], %129 {strides = array<i32>} : memref<1x48x512xf32, #tpu.memory_space<vmem>>, vector<1x8x256xf32>,
    %130 = vector.extract_strided_slice %13 {offsets = [40, 0], sizes = [8, 512], strides = [1, 1]} : vector<48x512xf32> to vector<8x512xf32>
    %131 = arith.addf %12, %130 : vector<8x512xf32>
    %cst_87 = arith.constant 0.000000e+00 : f32
    %132 = vector.broadcast %cst_87 : f32 to vector<8x512xf32>
    %133 = arith.maximumf %131, %132 : vector<8x512xf32>
    %c0_88 = arith.constant 0 : index
    %c40 = arith.constant 40 : index
    %c0_89 = arith.constant 0 : index
    %134 = vector.load %arg5[%c0_88, %c40, %c0_89] : memref<1x48x512xf32, #tpu.memory_space<vmem>>, vector<1x8x512xf32>
    %135 = vector.shape_cast %134 : vector<1x8x512xf32> to vector<8x512xf32>
    %136 = vector.shape_cast %133 : vector<8x512xf32> to vector<1x8x512xf32>
    tpu.vector_store %arg5[%c0_88, %c40, %c0_89], %136 {strides = array<i32>} : memref<1x48x512xf32, #tpu.memory_space<vmem>>, vector<1x8x512xf32>,
    return
  }
  func.func @transform_0(%arg0: i32) -> (i32, i32, i32) {
    %c0_i32 = arith.constant 0 : i32
    %c0_i32_0 = arith.constant 0 : i32
    %c0_i32_1 = arith.constant 0 : i32
    return %arg0, %c0_i32, %c0_i32_0 : i32, i32, i32
  }
  func.func @transform_1(%arg0: i32) -> (i32, i32) {
    %c0_i32 = arith.constant 0 : i32
    %c0_i32_0 = arith.constant 0 : i32
    %c0_i32_1 = arith.constant 0 : i32
    return %c0_i32, %c0_i32_0 : i32, i32
  }
  func.func @transform_2(%arg0: i32) -> (i32, i32) {
    %c0_i32 = arith.constant 0 : i32
    %c0_i32_0 = arith.constant 0 : i32
    %c0_i32_1 = arith.constant 0 : i32
    return %c0_i32, %c0_i32_0 : i32, i32
  }
  func.func @transform_3(%arg0: i32) -> (i32, i32) {
    %c0_i32 = arith.constant 0 : i32
    %c0_i32_0 = arith.constant 0 : i32
    %c0_i32_1 = arith.constant 0 : i32
    return %c0_i32, %c0_i32_0 : i32, i32
  }
  func.func @transform_4(%arg0: i32) -> (i32, i32, i32) {
    %c0_i32 = arith.constant 0 : i32
    %c0_i32_0 = arith.constant 0 : i32
    %c0_i32_1 = arith.constant 0 : i32
    return %arg0, %c0_i32, %c0_i32_0 : i32, i32, i32
  }
}

</mosaic_0001>

<llo_original>
// kernel: tpu_custom_call.1
$region0: #{tpu_custom_call.1}
  #allocation0 [shape = 'u32[]', space=smem, size = 0x4, offset = 0x4, fixed_abs, tag = 'smem constant byte address 0x4 - core index']
  #allocation1 [shape = 'u32[144,128]{1,0:T(1,128)}', space=vmem, size = 0x12000, scoped, tag = 'internal scratch']
  #allocation2 [shape = 'f32[40,768]{1,0:T(8,128)}', space=vmem, size = 0x1e000, scoped, tag = 'scratch operand']
  %s0 = inlined_call_operand.vmem [shape: f32[1,8,512], index: 0, kind: input, shape index: {}]
  %s1 = inlined_call_operand.vmem [shape: f32[96,8], index: 1, kind: input, shape index: {}]
  %s2 = inlined_call_operand.vmem [shape: f32[32,24], index: 2, kind: input, shape index: {}]
  %s3 = inlined_call_operand.vmem [shape: f32[8,1], index: 3, kind: input, shape index: {}]
  %s4 = inlined_call_operand.hbm [shape: f32[1,48,512], index: 4, kind: output, shape index: {}]
  %s5 = sld [smem:[#allocation0]]
  $region26: #{tpu_custom_call.1} parent=0
    _
  %s7 = ssub.s32 1, %s5
  %s8 = scalar_select 0, %s7, %s5
  $region1: #{tpu_custom_call.1} parent=0
    #allocation3 [shape = 'u8[98304]{0}', space=vmem, size = 0x18000, scoped, tag = 'output window, operand 0, single buffered']
    #allocation4 [shape = 's32[1]{0}', space=sflag, size = 0x4, scoped, tag = 'scoped memory for tpu_custom_call.1']
    %9 = vsyncpa [#allocation4], 0
    // Predicated region
    $region2: #{tpu_custom_call.1} parent=1 // pred_check
      _
    $region3: #{tpu_custom_call.1} parent=1 // pred_check_branch
      %11 = sbr.rel (0) target = $region5
    $region4: #{tpu_custom_call.1} parent=1 // pred_region
      _
    $region5: #{tpu_custom_call.1} parent=1 // pred_fallthru
      _
    // Predicated region
    $region6: #{tpu_custom_call.1} parent=1 // pred_check
      _
    $region7: #{tpu_custom_call.1} parent=1 // pred_check_branch
      %13 = sbr.rel (0) target = $region9
    $region8: #{tpu_custom_call.1} parent=1 // pred_region
      _
    $region9: #{tpu_custom_call.1} parent=1 // pred_fallthru
      _
    // Predicated region
    $region10: #{tpu_custom_call.1} parent=1 // pred_check
      _
    $region11: #{tpu_custom_call.1} parent=1 // pred_check_branch
      %15 = sbr.rel (0) target = $region13
    $region12: #{tpu_custom_call.1} parent=1 // pred_region
      _
    $region13: #{tpu_custom_call.1} parent=1 // pred_fallthru
      _
    // Predicated region
    $region14: #{tpu_custom_call.1} parent=1 // pred_check
      _
    $region15: #{tpu_custom_call.1} parent=1 // pred_check_branch
      %17 = sbr.rel (0) target = $region17
    $region16: #{tpu_custom_call.1} parent=1 // pred_region
      _
    $region17: #{tpu_custom_call.1} parent=1 // pred_fallthru
      _
    %vm18 = vcmask 523264
    %19 = vst.msk [vmem:[#allocation2] sm:$0xff] %vm18, 0.0
    %20 = vst.msk [vmem:[#allocation2 + $0x30] sm:$0xff] %vm18, 0.0
    %21 = vst.msk [vmem:[#allocation2 + $0x60] sm:$0xff] %vm18, 0.0
    %22 = vst.msk [vmem:[#allocation2 + $0x90] sm:$0xff] %vm18, 0.0
    %23 = vst.msk [vmem:[#allocation2 + $0xc0] sm:$0xff] %vm18, 0.0
    %vm24 = vcmask 1048064
    %25 = vst.msk [vmem:[#allocation2 + $0x10] sm:$0xff] %vm24, 0.0
    %26 = vst.msk [vmem:[#allocation2 + $0x40] sm:$0xff] %vm24, 0.0
    %27 = vst.msk [vmem:[#allocation2 + $0x70] sm:$0xff] %vm24, 0.0
    %28 = vst.msk [vmem:[#allocation2 + $0xa0] sm:$0xff] %vm24, 0.0
    %29 = vst.msk [vmem:[#allocation2 + $0xd0] sm:$0xff] %vm24, 0.0
    %30 = vst.msk [vmem:[#allocation2 + $0x18] sm:$0xff] %vm18, 0.0
    %31 = vst.msk [vmem:[#allocation2 + $0x48] sm:$0xff] %vm18, 0.0
    %32 = vst.msk [vmem:[#allocation2 + $0x78] sm:$0xff] %vm18, 0.0
    %33 = vst.msk [vmem:[#allocation2 + $0xa8] sm:$0xff] %vm18, 0.0
    %34 = vst.msk [vmem:[#allocation2 + $0xd8] sm:$0xff] %vm18, 0.0
    %35 = vst.msk [vmem:[#allocation2 + $0x28] sm:$0xff] %vm24, 0.0
    %36 = vst.msk [vmem:[#allocation2 + $0x58] sm:$0xff] %vm24, 0.0
    %37 = vst.msk [vmem:[#allocation2 + $0x88] sm:$0xff] %vm24, 0.0
    %38 = vst.msk [vmem:[#allocation2 + $0xb8] sm:$0xff] %vm24, 0.0
    %39 = vst.msk [vmem:[#allocation2 + $0xe8] sm:$0xff] %vm24, 0.0
    %v40 = vld [vmem:[%s1] sm:$0xff]
    %v41 = vld [vmem:[%s1 + $0x8] sm:$0xff]
    %v42 = vld [vmem:[%s1 + $0x10] sm:$0xff]
    %v43 = vld [vmem:[%s1 + $0x18] sm:$0xff]
    %v44 = vld [vmem:[%s1 + $0x20] sm:$0xff]
    %v45 = vld [vmem:[%s1 + $0x28] sm:$0xff]
    %v46 = vld [vmem:[%s1 + $0x30] sm:$0xff]
    %v47 = vld [vmem:[%s1 + $0x38] sm:$0xff]
    %v48 = vld [vmem:[%s1 + $0x40] sm:$0xff]
    %v49 = vld [vmem:[%s1 + $0x48] sm:$0xff]
    %v50 = vld [vmem:[%s1 + $0x50] sm:$0xff]
    %v51 = vld [vmem:[%s1 + $0x58] sm:$0xff]
    %v52 = vld [vmem:[%s0] sm:$0xff]
    %v53 = vld [vmem:[%s0 + $0x8] sm:$0xff]
    %v54 = vld [vmem:[%s0 + $0x10] sm:$0xff]
    %v55 = vld [vmem:[%s0 + $0x18] sm:$0xff]
    %vm56 = vcmask 64512
    %v58 = vsel %vm56, %v40, 0
    %v61 = vsel %vm56, %v41, 0
    %v64 = vsel %vm56, %v42, 0
    %v67 = vsel %vm56, %v43, 0
    %v70 = vsel %vm56, %v44, 0
    %v73 = vsel %vm56, %v45, 0
    %v76 = vsel %vm56, %v46, 0
    %v79 = vsel %vm56, %v47, 0
    %v82 = vsel %vm56, %v48, 0
    %v85 = vsel %vm56, %v49, 0
    %v88 = vsel %vm56, %v50, 0
    %v91 = vsel %vm56, %v51, 0
    %93 = vmatprep.subr.mxu0 0.0
    %94 = vmatpush1.msra.mxu0 0.0
    %95 = vmatprep.subr.mxu0 0.0
    %96 = vmatpush1.msra.mxu0 0.0
    %97 = vmatprep.subr.mxu0 0.0
    %98 = vmatpush1.msra.mxu0 0.0
    %99 = vmatprep.subr.mxu0 0.0
    %100 = vmatpush1.msra.mxu0 0.0
    %101 = vmatprep.subr.mxu0 0.0
    %102 = vmatpush1.msra.mxu0 0.0
    %103 = vmatprep.subr.mxu0 0.0
    %104 = vmatpush1.msra.mxu0 0.0
    %105 = vmatprep.subr.mxu0 0.0
    %106 = vmatpush1.msra.mxu0 0.0
    %107 = vmatprep.subr.mxu0 0.0
    %108 = vmatpush1.msra.mxu0 0.0
    %109 = vmatprep.subr.mxu0 0.0
    %110 = vmatpush1.msra.mxu0 0.0
    %111 = vmatprep.subr.mxu0 0.0
    %112 = vmatpush1.msra.mxu0 0.0
    %113 = vmatprep.subr.mxu0 0.0
    %114 = vmatpush1.msra.mxu0 0.0
    %115 = vmatprep.subr.mxu0 0.0
    %116 = vmatpush1.msra.mxu0 0.0
    %117 = vmatprep.subr.mxu0 0.0
    %118 = vmatpush1.msra.mxu0 0.0
    %119 = vmatprep.subr.mxu0 0.0
    %120 = vmatpush1.msra.mxu0 0.0
    %121 = vmatprep.subr.mxu0 0.0
    %122 = vmatpush1.msra.mxu0 0.0
    %123 = vmatprep.subr.mxu0 %v53
    %124 = vmatpush1.msra.mxu0 %v52
    %125 = vmatprep.subr.mxu0 0.0
    %126 = vmatpush2.msra.mxu0 0.0
    %127 = vmatprep.subr.mxu0 0.0
    %128 = vmatpush2.msra.mxu0 0.0
    %129 = vmatprep.subr.mxu0 0.0
    %130 = vmatpush2.msra.mxu0 0.0
    %131 = vmatprep.subr.mxu0 0.0
    %132 = vmatpush2.msra.mxu0 0.0
    %133 = vmatprep.subr.mxu0 0.0
    %134 = vmatpush2.msra.mxu0 0.0
    %135 = vmatprep.subr.mxu0 0.0
    %136 = vmatpush2.msra.mxu0 0.0
    %137 = vmatprep.subr.mxu0 0.0
    %138 = vmatpush2.msra.mxu0 0.0
    %139 = vmatprep.subr.mxu0 0.0
    %140 = vmatpush2.msra.mxu0 0.0
    %141 = vmatprep.subr.mxu0 0.0
    %142 = vmatpush2.msra.mxu0 0.0
    %143 = vmatprep.subr.mxu0 0.0
    %144 = vmatpush2.msra.mxu0 0.0
    %145 = vmatprep.subr.mxu0 0.0
    %146 = vmatpush2.msra.mxu0 0.0
    %147 = vmatprep.subr.mxu0 0.0
    %148 = vmatpush2.msra.mxu0 0.0
    %149 = vmatprep.subr.mxu0 0.0
    %150 = vmatpush2.msra.mxu0 0.0
    %151 = vmatprep.subr.mxu0 0.0
    %152 = vmatpush2.msra.mxu0 0.0
    %153 = vmatprep.subr.mxu0 0.0
    %154 = vmatpush2.msra.mxu0 0.0
    %155 = vmatprep.subr.mxu0 0.0
    %156 = vmatpush2.msra.mxu0 0.0
    %157 = vmatprep.mubr.f32.mxu0 0.0
    %158 = vmatmul.mubr.f32.gmra.mxu0 %v58
    %v159 = vpop.f32.mrf.mxu0
    %v160 = vadd.f32 0.0, %v159
    %v161 = vpop.f32.mrf.mxu0
    %v162 = vadd.f32 0.0, %v161
    %163 = vmatprep.mubr.f32.mxu0 0.0
    %164 = vmatmul.mubr.f32.gmra.mxu0 %v61
    %v165 = vpop.f32.mrf.mxu0
    %v166 = vadd.f32 0.0, %v165
    %v167 = vpop.f32.mrf.mxu0
    %v168 = vadd.f32 0.0, %v167
    %169 = vmatprep.mubr.f32.mxu0 0.0
    %170 = vmatmul.mubr.f32.gmra.mxu0 %v64
    %v171 = vpop.f32.mrf.mxu0
    %v172 = vadd.f32 0.0, %v171
    %v173 = vpop.f32.mrf.mxu0
    %v174 = vadd.f32 0.0, %v173
    %175 = vmatprep.mubr.f32.mxu0 0.0
    %176 = vmatmul.mubr.f32.gmra.mxu0 %v67
    %v177 = vpop.f32.mrf.mxu0
    %v178 = vadd.f32 0.0, %v177
    %v179 = vpop.f32.mrf.mxu0
    %v180 = vadd.f32 0.0, %v179
    %181 = vmatprep.mubr.f32.mxu0 0.0
    %182 = vmatmul.mubr.f32.gmra.mxu0 %v70
    %v183 = vpop.f32.mrf.mxu0
    %v184 = vadd.f32 0.0, %v183
    %v185 = vpop.f32.mrf.mxu0
    %v186 = vadd.f32 0.0, %v185
    %187 = vmatprep.mubr.f32.mxu0 0.0
    %188 = vmatmul.mubr.f32.gmra.mxu0 %v73
    %v189 = vpop.f32.mrf.mxu0
    %v190 = vadd.f32 0.0, %v189
    %v191 = vpop.f32.mrf.mxu0
    %v192 = vadd.f32 0.0, %v191
    %193 = vmatprep.mubr.f32.mxu0 0.0
    %194 = vmatmul.mubr.f32.gmra.mxu0 %v76
    %v195 = vpop.f32.mrf.mxu0
    %v196 = vadd.f32 0.0, %v195
    %v197 = vpop.f32.mrf.mxu0
    %v198 = vadd.f32 0.0, %v197
    %199 = vmatprep.mubr.f32.mxu0 0.0
    %200 = vmatmul.mubr.f32.gmra.mxu0 %v79
    %v201 = vpop.f32.mrf.mxu0
    %v202 = vadd.f32 0.0, %v201
    %v203 = vpop.f32.mrf.mxu0
    %v204 = vadd.f32 0.0, %v203
    %205 = vmatprep.mubr.f32.mxu0 0.0
    %206 = vmatmul.mubr.f32.gmra.mxu0 %v82
    %v207 = vpop.f32.mrf.mxu0
    %v208 = vadd.f32 0.0, %v207
    %v209 = vpop.f32.mrf.mxu0
    %v210 = vadd.f32 0.0, %v209
    %211 = vmatprep.mubr.f32.mxu0 0.0
    %212 = vmatmul.mubr.f32.gmra.mxu0 %v85
    %v213 = vpop.f32.mrf.mxu0
    %v214 = vadd.f32 0.0, %v213
    %v215 = vpop.f32.mrf.mxu0
    %v216 = vadd.f32 0.0, %v215
    %217 = vmatprep.mubr.f32.mxu0 0.0
    %218 = vmatmul.mubr.f32.gmra.mxu0 %v88
    %v219 = vpop.f32.mrf.mxu0
    %v220 = vadd.f32 0.0, %v219
    %v221 = vpop.f32.mrf.mxu0
    %v222 = vadd.f32 0.0, %v221
    %223 = vmatprep.mubr.f32.mxu0 0.0
    %224 = vmatmul.mubr.f32.gmra.mxu0 %v91
    %v225 = vpop.f32.mrf.mxu0
    %v226 = vadd.f32 0.0, %v225
    %v227 = vpop.f32.mrf.mxu0
    %v228 = vadd.f32 0.0, %v227
    %229 = vdwg.mxu0
    %230 = vmatprep.subr.mxu0 0.0
    %231 = vmatpush1.msra.mxu0 0.0
    %232 = vmatprep.subr.mxu0 0.0
    %233 = vmatpush1.msra.mxu0 0.0
    %234 = vmatprep.subr.mxu0 0.0
    %235 = vmatpush1.msra.mxu0 0.0
    %236 = vmatprep.subr.mxu0 0.0
    %237 = vmatpush1.msra.mxu0 0.0
    %238 = vmatprep.subr.mxu0 0.0
    %239 = vmatpush1.msra.mxu0 0.0
    %240 = vmatprep.subr.mxu0 0.0
    %241 = vmatpush1.msra.mxu0 0.0
    %242 = vmatprep.subr.mxu0 0.0
    %243 = vmatpush1.msra.mxu0 0.0
    %244 = vmatprep.subr.mxu0 0.0
    %245 = vmatpush1.msra.mxu0 0.0
    %246 = vmatprep.subr.mxu0 0.0
    %247 = vmatpush1.msra.mxu0 0.0
    %248 = vmatprep.subr.mxu0 0.0
    %249 = vmatpush1.msra.mxu0 0.0
    %250 = vmatprep.subr.mxu0 0.0
    %251 = vmatpush1.msra.mxu0 0.0
    %252 = vmatprep.subr.mxu0 0.0
    %253 = vmatpush1.msra.mxu0 0.0
    %254 = vmatprep.subr.mxu0 0.0
    %255 = vmatpush1.msra.mxu0 0.0
    %256 = vmatprep.subr.mxu0 0.0
    %257 = vmatpush1.msra.mxu0 0.0
    %258 = vmatprep.subr.mxu0 0.0
    %259 = vmatpush1.msra.mxu0 0.0
    %260 = vmatprep.subr.mxu0 %v55
    %261 = vmatpush1.msra.mxu0 %v54
    %262 = vmatprep.subr.mxu0 0.0
    %263 = vmatpush2.msra.mxu0 0.0
    %264 = vmatprep.subr.mxu0 0.0
    %265 = vmatpush2.msra.mxu0 0.0
    %266 = vmatprep.subr.mxu0 0.0
    %267 = vmatpush2.msra.mxu0 0.0
    %268 = vmatprep.subr.mxu0 0.0
    %269 = vmatpush2.msra.mxu0 0.0
    %270 = vmatprep.subr.mxu0 0.0
    %271 = vmatpush2.msra.mxu0 0.0
    %272 = vmatprep.subr.mxu0 0.0
    %273 = vmatpush2.msra.mxu0 0.0
    %274 = vmatprep.subr.mxu0 0.0
    %275 = vmatpush2.msra.mxu0 0.0
    %276 = vmatprep.subr.mxu0 0.0
    %277 = vmatpush2.msra.mxu0 0.0
    %278 = vmatprep.subr.mxu0 0.0
    %279 = vmatpush2.msra.mxu0 0.0
    %280 = vmatprep.subr.mxu0 0.0
    %281 = vmatpush2.msra.mxu0 0.0
    %282 = vmatprep.subr.mxu0 0.0
    %283 = vmatpush2.msra.mxu0 0.0
    %284 = vmatprep.subr.mxu0 0.0
    %285 = vmatpush2.msra.mxu0 0.0
    %286 = vmatprep.subr.mxu0 0.0
    %287 = vmatpush2.msra.mxu0 0.0
    %288 = vmatprep.subr.mxu0 0.0
    %289 = vmatpush2.msra.mxu0 0.0
    %290 = vmatprep.subr.mxu0 0.0
    %291 = vmatpush2.msra.mxu0 0.0
    %292 = vmatprep.subr.mxu0 0.0
    %293 = vmatpush2.msra.mxu0 0.0
    %294 = vmatprep.mubr.f32.mxu0 0.0
    %295 = vmatmul.mubr.f32.gmra.mxu0 %v58
    %v296 = vpop.f32.mrf.mxu0
    %v297 = vadd.f32 0.0, %v296
    %v298 = vpop.f32.mrf.mxu0
    %v299 = vadd.f32 0.0, %v298
    %300 = vmatprep.mubr.f32.mxu0 0.0
    %301 = vmatmul.mubr.f32.gmra.mxu0 %v61
    %v302 = vpop.f32.mrf.mxu0
    %v303 = vadd.f32 0.0, %v302
    %v304 = vpop.f32.mrf.mxu0
    %v305 = vadd.f32 0.0, %v304
    %306 = vmatprep.mubr.f32.mxu0 0.0
    %307 = vmatmul.mubr.f32.gmra.mxu0 %v64
    %v308 = vpop.f32.mrf.mxu0
    %v309 = vadd.f32 0.0, %v308
    %v310 = vpop.f32.mrf.mxu0
    %v311 = vadd.f32 0.0, %v310
    %312 = vmatprep.mubr.f32.mxu0 0.0
    %313 = vmatmul.mubr.f32.gmra.mxu0 %v67
    %v314 = vpop.f32.mrf.mxu0
    %v315 = vadd.f32 0.0, %v314
    %v316 = vpop.f32.mrf.mxu0
    %v317 = vadd.f32 0.0, %v316
    %318 = vmatprep.mubr.f32.mxu0 0.0
    %319 = vmatmul.mubr.f32.gmra.mxu0 %v70
    %v320 = vpop.f32.mrf.mxu0
    %v321 = vadd.f32 0.0, %v320
    %v322 = vpop.f32.mrf.mxu0
    %v323 = vadd.f32 0.0, %v322
    %324 = vmatprep.mubr.f32.mxu0 0.0
    %325 = vmatmul.mubr.f32.gmra.mxu0 %v73
    %v326 = vpop.f32.mrf.mxu0
    %v327 = vadd.f32 0.0, %v326
    %v328 = vpop.f32.mrf.mxu0
    %v329 = vadd.f32 0.0, %v328
    %330 = vmatprep.mubr.f32.mxu0 0.0
    %331 = vmatmul.mubr.f32.gmra.mxu0 %v76
    %v332 = vpop.f32.mrf.mxu0
    %v333 = vadd.f32 0.0, %v332
    %v334 = vpop.f32.mrf.mxu0
    %v335 = vadd.f32 0.0, %v334
    %336 = vmatprep.mubr.f32.mxu0 0.0
    %337 = vmatmul.mubr.f32.gmra.mxu0 %v79
    %v338 = vpop.f32.mrf.mxu0
    %v339 = vadd.f32 0.0, %v338
    %v340 = vpop.f32.mrf.mxu0
    %v341 = vadd.f32 0.0, %v340
    %342 = vmatprep.mubr.f32.mxu0 0.0
    %343 = vmatmul.mubr.f32.gmra.mxu0 %v82
    %v344 = vpop.f32.mrf.mxu0
    %v345 = vadd.f32 0.0, %v344
    %v346 = vpop.f32.mrf.mxu0
    %v347 = vadd.f32 0.0, %v346
    %348 = vmatprep.mubr.f32.mxu0 0.0
    %349 = vmatmul.mubr.f32.gmra.mxu0 %v85
    %v350 = vpop.f32.mrf.mxu0
    %v351 = vadd.f32 0.0, %v350
    %v352 = vpop.f32.mrf.mxu0
    %v353 = vadd.f32 0.0, %v352
    %354 = vmatprep.mubr.f32.mxu0 0.0
    %355 = vmatmul.mubr.f32.gmra.mxu0 %v88
    %v356 = vpop.f32.mrf.mxu0
    %v357 = vadd.f32 0.0, %v356
    %v358 = vpop.f32.mrf.mxu0
    %v359 = vadd.f32 0.0, %v358
    %360 = vmatprep.mubr.f32.mxu0 0.0
    %361 = vmatmul.mubr.f32.gmra.mxu0 %v91
    %v362 = vpop.f32.mrf.mxu0
    %v363 = vadd.f32 0.0, %v362
    %v364 = vpop.f32.mrf.mxu0
    %v365 = vadd.f32 0.0, %v364
    %366 = vdwg.mxu0
    %v367 = vmax.f32 %v160, 0.0
    %v368 = vmax.f32 %v162, 0.0
    %v369 = vmax.f32 %v297, 0.0
    %v370 = vmax.f32 %v299, 0.0
    %v371 = vmax.f32 %v166, 0.0
    %v372 = vmax.f32 %v168, 0.0
    %v373 = vmax.f32 %v303, 0.0
    %v374 = vmax.f32 %v305, 0.0
    %v375 = vmax.f32 %v172, 0.0
    %v376 = vmax.f32 %v174, 0.0
    %v377 = vmax.f32 %v309, 0.0
    %v378 = vmax.f32 %v311, 0.0
    %v379 = vmax.f32 %v178, 0.0
    %v380 = vmax.f32 %v180, 0.0
    %v381 = vmax.f32 %v315, 0.0
    %v382 = vmax.f32 %v317, 0.0
    %v383 = vmax.f32 %v184, 0.0
    %v384 = vmax.f32 %v186, 0.0
    %v385 = vmax.f32 %v321, 0.0
    %v386 = vmax.f32 %v323, 0.0
    %397 = vrot.lane.b32.xlu0 %v367, 64
    %v398 = vpop.permute.xlu0 %397
    %399 = vrot.lane.b32.xlu0 %v368, 64
    %v400 = vpop.permute.xlu0 %399
    %401 = vrot.lane.b32.xlu0 %v371, 64
    %v402 = vpop.permute.xlu0 %401
    %403 = vrot.lane.b32.xlu0 %v372, 64
    %v404 = vpop.permute.xlu0 %403
    %405 = vrot.lane.b32.xlu0 %v375, 64
    %v406 = vpop.permute.xlu0 %405
    %407 = vrot.lane.b32.xlu0 %v376, 64
    %v408 = vpop.permute.xlu0 %407
    %409 = vrot.lane.b32.xlu0 %v379, 64
    %v410 = vpop.permute.xlu0 %409
    %411 = vrot.lane.b32.xlu0 %v380, 64
    %v412 = vpop.permute.xlu0 %411
    %413 = vrot.lane.b32.xlu0 %v383, 64
    %v414 = vpop.permute.xlu0 %413
    %415 = vrot.lane.b32.xlu0 %v384, 64
    %v416 = vpop.permute.xlu0 %415
    %v417 = vsel %vm18, %v398, %v400
    %v418 = vsel %vm18, %v402, %v404
    %v419 = vsel %vm18, %v406, %v408
    %v420 = vsel %vm18, %v410, %v412
    %v421 = vsel %vm18, %v414, %v416
    %437 = vst.msk [vmem:[#allocation2] sm:$0xff] %vm24, %v398
    %438 = vst [vmem:[#allocation2 + $0x8] sm:$0xff] %v417
    %439 = vst.msk [vmem:[#allocation2 + $0x10] sm:$0xff] %vm18, %v400
    %440 = vst.msk [vmem:[#allocation2 + $0x30] sm:$0xff] %vm24, %v402
    %441 = vst [vmem:[#allocation2 + $0x38] sm:$0xff] %v418
    %442 = vst.msk [vmem:[#allocation2 + $0x40] sm:$0xff] %vm18, %v404
    %443 = vst.msk [vmem:[#allocation2 + $0x60] sm:$0xff] %vm24, %v406
    %444 = vst [vmem:[#allocation2 + $0x68] sm:$0xff] %v419
    %445 = vst.msk [vmem:[#allocation2 + $0x70] sm:$0xff] %vm18, %v408
    %446 = vst.msk [vmem:[#allocation2 + $0x90] sm:$0xff] %vm24, %v410
    %447 = vst [vmem:[#allocation2 + $0x98] sm:$0xff] %v420
    %448 = vst.msk [vmem:[#allocation2 + $0xa0] sm:$0xff] %vm18, %v412
    %449 = vst.msk [vmem:[#allocation2 + $0xc0] sm:$0xff] %vm24, %v414
    %450 = vst [vmem:[#allocation2 + $0xc8] sm:$0xff] %v421
    %451 = vst.msk [vmem:[#allocation2 + $0xd0] sm:$0xff] %vm18, %v416
    %462 = vrot.lane.b32.xlu0 %v369, 64
    %v463 = vpop.permute.xlu0 %462
    %464 = vrot.lane.b32.xlu0 %v370, 64
    %v465 = vpop.permute.xlu0 %464
    %466 = vrot.lane.b32.xlu0 %v373, 64
    %v467 = vpop.permute.xlu0 %466
    %468 = vrot.lane.b32.xlu0 %v374, 64
    %v469 = vpop.permute.xlu0 %468
    %470 = vrot.lane.b32.xlu0 %v377, 64
    %v471 = vpop.permute.xlu0 %470
    %472 = vrot.lane.b32.xlu0 %v378, 64
    %v473 = vpop.permute.xlu0 %472
    %474 = vrot.lane.b32.xlu0 %v381, 64
    %v475 = vpop.permute.xlu0 %474
    %476 = vrot.lane.b32.xlu0 %v382, 64
    %v477 = vpop.permute.xlu0 %476
    %478 = vrot.lane.b32.xlu0 %v385, 64
    %v479 = vpop.permute.xlu0 %478
    %480 = vrot.lane.b32.xlu0 %v386, 64
    %v481 = vpop.permute.xlu0 %480
    %v482 = vsel %vm18, %v463, %v465
    %v483 = vsel %vm18, %v467, %v469
    %v484 = vsel %vm18, %v471, %v473
    %v485 = vsel %vm18, %v475, %v477
    %v486 = vsel %vm18, %v479, %v481
    %502 = vst.msk [vmem:[#allocation2 + $0x18] sm:$0xff] %vm24, %v463
    %503 = vst [vmem:[#allocation2 + $0x20] sm:$0xff] %v482
    %504 = vst.msk [vmem:[#allocation2 + $0x28] sm:$0xff] %vm18, %v465
    %505 = vst.msk [vmem:[#allocation2 + $0x48] sm:$0xff] %vm24, %v467
    %506 = vst [vmem:[#allocation2 + $0x50] sm:$0xff] %v483
    %507 = vst.msk [vmem:[#allocation2 + $0x58] sm:$0xff] %vm18, %v469
    %508 = vst.msk [vmem:[#allocation2 + $0x78] sm:$0xff] %vm24, %v471
    %509 = vst [vmem:[#allocation2 + $0x80] sm:$0xff] %v484
    %510 = vst.msk [vmem:[#allocation2 + $0x88] sm:$0xff] %vm18, %v473
    %511 = vst.msk [vmem:[#allocation2 + $0xa8] sm:$0xff] %vm24, %v475
    %512 = vst [vmem:[#allocation2 + $0xb0] sm:$0xff] %v485
    %513 = vst.msk [vmem:[#allocation2 + $0xb8] sm:$0xff] %vm18, %v477
    %514 = vst.msk [vmem:[#allocation2 + $0xd8] sm:$0xff] %vm24, %v479
    %515 = vst [vmem:[#allocation2 + $0xe0] sm:$0xff] %v486
    %516 = vst.msk [vmem:[#allocation2 + $0xe8] sm:$0xff] %vm18, %v481
    %v517 = vld [vmem:[#allocation2] sm:$0xff]
    %v518 = vld [vmem:[#allocation2 + $0x8] sm:$0xff]
    %v519 = vld [vmem:[#allocation2 + $0x10] sm:$0xff]
    %v520 = vld [vmem:[#allocation2 + $0x18] sm:$0xff]
    %v521 = vld [vmem:[#allocation2 + $0x20] sm:$0xff]
    %v522 = vld [vmem:[#allocation2 + $0x28] sm:$0xff]
    %529 = vrot.lane.b32.xlu0 %v517, 112
    %v530 = vpop.permute.xlu0 %529
    %531 = vrot.lane.b32.xlu0 %v518, 112
    %v532 = vpop.permute.xlu0 %531
    %533 = vrot.lane.b32.xlu0 %v519, 112
    %v534 = vpop.permute.xlu0 %533
    %535 = vrot.lane.b32.xlu0 %v520, 112
    %v536 = vpop.permute.xlu0 %535
    %537 = vrot.lane.b32.xlu0 %v521, 112
    %v538 = vpop.permute.xlu0 %537
    %539 = vrot.lane.b32.xlu0 %v522, 112
    %v540 = vpop.permute.xlu0 %539
    %vm541 = vcmask 916480
    %v542 = vsel %vm541, %v530, %v532
    %v543 = vsel %vm541, %v532, %v534
    %v544 = vsel %vm541, %v534, %v536
    %v545 = vsel %vm541, %v536, %v538
    %v546 = vsel %vm541, %v538, %v540
    %547 = vrot.lane.b32.xlu0 %v517, 96
    %v548 = vpop.permute.xlu0 %547
    %549 = vrot.lane.b32.xlu0 %v518, 96
    %v550 = vpop.permute.xlu0 %549
    %551 = vrot.lane.b32.xlu0 %v519, 96
    %v552 = vpop.permute.xlu0 %551
    %553 = vrot.lane.b32.xlu0 %v520, 96
    %v554 = vpop.permute.xlu0 %553
    %555 = vrot.lane.b32.xlu0 %v521, 96
    %v556 = vpop.permute.xlu0 %555
    %557 = vrot.lane.b32.xlu0 %v522, 96
    %v558 = vpop.permute.xlu0 %557
    %vm559 = vcmask 785408
    %v560 = vsel %vm559, %v548, %v550
    %v561 = vsel %vm559, %v550, %v552
    %v562 = vsel %vm559, %v552, %v554
    %v563 = vsel %vm559, %v554, %v556
    %v564 = vsel %vm559, %v556, %v558
    %v565 = vld [vmem:[%s2] sm:$0xff]
    %566 = vrot.lane.b32.xlu0 %v517, 80
    %v567 = vpop.permute.xlu0 %566
    %568 = vrot.lane.b32.xlu0 %v518, 80
    %v569 = vpop.permute.xlu0 %568
    %570 = vrot.lane.b32.xlu0 %v519, 80
    %v571 = vpop.permute.xlu0 %570
    %572 = vrot.lane.b32.xlu0 %v520, 80
    %v573 = vpop.permute.xlu0 %572
    %574 = vrot.lane.b32.xlu0 %v521, 80
    %v575 = vpop.permute.xlu0 %574
    %576 = vrot.lane.b32.xlu0 %v522, 80
    %v577 = vpop.permute.xlu0 %576
    %578 = vrot.lane.b32.xlu0 %v542, 80
    %v579 = vpop.permute.xlu0 %578
    %580 = vrot.lane.b32.xlu0 %v543, 80
    %v581 = vpop.permute.xlu0 %580
    %582 = vrot.lane.b32.xlu0 %v544, 80
    %v583 = vpop.permute.xlu0 %582
    %584 = vrot.lane.b32.xlu0 %v545, 80
    %v585 = vpop.permute.xlu0 %584
    %586 = vrot.lane.b32.xlu0 %v546, 80
    %v587 = vpop.permute.xlu0 %586
    %588 = vrot.lane.b32.xlu0 %v540, 80
    %v589 = vpop.permute.xlu0 %588
    %590 = vrot.lane.b32.xlu0 %v560, 80
    %v591 = vpop.permute.xlu0 %590
    %592 = vrot.lane.b32.xlu0 %v561, 80
    %v593 = vpop.permute.xlu0 %592
    %594 = vrot.lane.b32.xlu0 %v562, 80
    %v595 = vpop.permute.xlu0 %594
    %596 = vrot.lane.b32.xlu0 %v563, 80
    %v597 = vpop.permute.xlu0 %596
    %598 = vrot.lane.b32.xlu0 %v564, 80
    %v599 = vpop.permute.xlu0 %598
    %600 = vrot.lane.b32.xlu0 %v558, 80
    %v601 = vpop.permute.xlu0 %600
    %vm602 = vcmask 654336
    %v603 = vsel %vm602, %v567, %v569
    %v604 = vsel %vm602, %v569, %v571
    %v605 = vsel %vm602, %v571, %v573
    %v606 = vsel %vm602, %v573, %v575
    %v607 = vsel %vm602, %v575, %v577
    %v608 = vsel %vm602, %v579, %v581
    %v609 = vsel %vm602, %v581, %v583
    %v610 = vsel %vm602, %v583, %v585
    %v611 = vsel %vm602, %v585, %v587
    %v612 = vsel %vm602, %v587, %v589
    %v613 = vsel %vm602, %v591, %v593
    %v614 = vsel %vm602, %v593, %v595
    %v615 = vsel %vm602, %v595, %v597
    %v616 = vsel %vm602, %v597, %v599
    %v617 = vsel %vm602, %v599, %v601
    %vm633 = vcmask 195584
    %v635 = vsel %vm633, %v565, 0
    %637 = vmatprep.subr.mxu0 0.0
    %638 = vmatpush1.msra.mxu0 0.0
    %639 = vmatprep.subr.mxu0 0.0
    %640 = vmatpush1.msra.mxu0 0.0
    %641 = vmatprep.subr.mxu0 0.0
    %642 = vmatpush1.msra.mxu0 0.0
    %643 = vmatprep.subr.mxu0 0.0
    %644 = vmatpush1.msra.mxu0 0.0
    %645 = vmatprep.subr.mxu0 0.0
    %646 = vmatpush1.msra.mxu0 0.0
    %647 = vmatprep.subr.mxu0 0.0
    %648 = vmatpush1.msra.mxu0 0.0
    %649 = vmatprep.subr.mxu0 0.0
    %650 = vmatpush1.msra.mxu0 0.0
    %651 = vmatprep.subr.mxu0 0.0
    %652 = vmatpush1.msra.mxu0 0.0
    %653 = vmatprep.subr.mxu0 0.0
    %654 = vmatpush1.msra.mxu0 0.0
    %655 = vmatprep.subr.mxu0 0.0
    %656 = vmatpush1.msra.mxu0 0.0
    %657 = vmatprep.subr.mxu0 0.0
    %658 = vmatpush1.msra.mxu0 0.0
    %659 = vmatprep.subr.mxu0 0.0
    %660 = vmatpush1.msra.mxu0 0.0
    %661 = vmatprep.subr.mxu0 0.0
    %662 = vmatpush1.msra.mxu0 0.0
    %663 = vmatprep.subr.mxu0 %v614
    %664 = vmatpush1.msra.mxu0 %v613
    %665 = vmatprep.subr.mxu0 %v609
    %666 = vmatpush1.msra.mxu0 %v608
    %667 = vmatprep.subr.mxu0 %v604
    %668 = vmatpush1.msra.mxu0 %v603
    %669 = vmatprep.subr.mxu0 0.0
    %670 = vmatpush2.msra.mxu0 0.0
    %671 = vmatprep.subr.mxu0 0.0
    %672 = vmatpush2.msra.mxu0 0.0
    %673 = vmatprep.subr.mxu0 0.0
    %674 = vmatpush2.msra.mxu0 0.0
    %675 = vmatprep.subr.mxu0 0.0
    %676 = vmatpush2.msra.mxu0 0.0
    %677 = vmatprep.subr.mxu0 0.0
    %678 = vmatpush2.msra.mxu0 0.0
    %679 = vmatprep.subr.mxu0 0.0
    %680 = vmatpush2.msra.mxu0 0.0
    %681 = vmatprep.subr.mxu0 0.0
    %682 = vmatpush2.msra.mxu0 0.0
    %683 = vmatprep.subr.mxu0 0.0
    %684 = vmatpush2.msra.mxu0 0.0
    %685 = vmatprep.subr.mxu0 0.0
    %686 = vmatpush2.msra.mxu0 0.0
    %687 = vmatprep.subr.mxu0 0.0
    %688 = vmatpush2.msra.mxu0 0.0
    %689 = vmatprep.subr.mxu0 0.0
    %690 = vmatpush2.msra.mxu0 0.0
    %691 = vmatprep.subr.mxu0 0.0
    %692 = vmatpush2.msra.mxu0 0.0
    %693 = vmatprep.subr.mxu0 0.0
    %694 = vmatpush2.msra.mxu0 0.0
    %695 = vmatprep.subr.mxu0 0.0
    %696 = vmatpush2.msra.mxu0 0.0
    %697 = vmatprep.subr.mxu0 0.0
    %698 = vmatpush2.msra.mxu0 0.0
    %699 = vmatprep.subr.mxu0 0.0
    %700 = vmatpush2.msra.mxu0 0.0
    %701 = vmatprep.mubr.f32.mxu0 0.0
    %702 = vmatmul.mubr.f32.gmra.mxu0 %v635
    %v703 = vpop.f32.mrf.mxu0
    %v704 = vadd.f32 0.0, %v703
    %v705 = vpop.f32.mrf.mxu0
    %v706 = vadd.f32 0.0, %v705
    %707 = vdwg.mxu0
    %708 = vmatprep.subr.mxu0 0.0
    %709 = vmatpush1.msra.mxu0 0.0
    %710 = vmatprep.subr.mxu0 0.0
    %711 = vmatpush1.msra.mxu0 0.0
    %712 = vmatprep.subr.mxu0 0.0
    %713 = vmatpush1.msra.mxu0 0.0
    %714 = vmatprep.subr.mxu0 0.0
    %715 = vmatpush1.msra.mxu0 0.0
    %716 = vmatprep.subr.mxu0 0.0
    %717 = vmatpush1.msra.mxu0 0.0
    %718 = vmatprep.subr.mxu0 0.0
    %719 = vmatpush1.msra.mxu0 0.0
    %720 = vmatprep.subr.mxu0 0.0
    %721 = vmatpush1.msra.mxu0 0.0
    %722 = vmatprep.subr.mxu0 0.0
    %723 = vmatpush1.msra.mxu0 0.0
    %724 = vmatprep.subr.mxu0 0.0
    %725 = vmatpush1.msra.mxu0 0.0
    %726 = vmatprep.subr.mxu0 0.0
    %727 = vmatpush1.msra.mxu0 0.0
    %728 = vmatprep.subr.mxu0 0.0
    %729 = vmatpush1.msra.mxu0 0.0
    %730 = vmatprep.subr.mxu0 0.0
    %731 = vmatpush1.msra.mxu0 0.0
    %732 = vmatprep.subr.mxu0 0.0
    %733 = vmatpush1.msra.mxu0 0.0
    %734 = vmatprep.subr.mxu0 %v616
    %735 = vmatpush1.msra.mxu0 %v615
    %736 = vmatprep.subr.mxu0 %v611
    %737 = vmatpush1.msra.mxu0 %v610
    %738 = vmatprep.subr.mxu0 %v606
    %739 = vmatpush1.msra.mxu0 %v605
    %740 = vmatprep.subr.mxu0 0.0
    %741 = vmatpush2.msra.mxu0 0.0
    %742 = vmatprep.subr.mxu0 0.0
    %743 = vmatpush2.msra.mxu0 0.0
    %744 = vmatprep.subr.mxu0 0.0
    %745 = vmatpush2.msra.mxu0 0.0
    %746 = vmatprep.subr.mxu0 0.0
    %747 = vmatpush2.msra.mxu0 0.0
    %748 = vmatprep.subr.mxu0 0.0
    %749 = vmatpush2.msra.mxu0 0.0
    %750 = vmatprep.subr.mxu0 0.0
    %751 = vmatpush2.msra.mxu0 0.0
    %752 = vmatprep.subr.mxu0 0.0
    %753 = vmatpush2.msra.mxu0 0.0
    %754 = vmatprep.subr.mxu0 0.0
    %755 = vmatpush2.msra.mxu0 0.0
    %756 = vmatprep.subr.mxu0 0.0
    %757 = vmatpush2.msra.mxu0 0.0
    %758 = vmatprep.subr.mxu0 0.0
    %759 = vmatpush2.msra.mxu0 0.0
    %760 = vmatprep.subr.mxu0 0.0
    %761 = vmatpush2.msra.mxu0 0.0
    %762 = vmatprep.subr.mxu0 0.0
    %763 = vmatpush2.msra.mxu0 0.0
    %764 = vmatprep.subr.mxu0 0.0
    %765 = vmatpush2.msra.mxu0 0.0
    %766 = vmatprep.subr.mxu0 0.0
    %767 = vmatpush2.msra.mxu0 0.0
    %768 = vmatprep.subr.mxu0 0.0
    %769 = vmatpush2.msra.mxu0 0.0
    %770 = vmatprep.subr.mxu0 0.0
    %771 = vmatpush2.msra.mxu0 0.0
    %772 = vmatprep.mubr.f32.mxu0 0.0
    %773 = vmatmul.mubr.f32.gmra.mxu0 %v635
    %v774 = vpop.f32.mrf.mxu0
    %v775 = vpop.f32.mrf.mxu0
    %v776 = vadd.f32 0.0, %v775
    %777 = vdwg.mxu0
    %778 = vmatprep.subr.mxu0 0.0
    %779 = vmatpush1.msra.mxu0 0.0
    %780 = vmatprep.subr.mxu0 0.0
    %781 = vmatpush1.msra.mxu0 0.0
    %782 = vmatprep.subr.mxu0 0.0
    %783 = vmatpush1.msra.mxu0 0.0
    %784 = vmatprep.subr.mxu0 0.0
    %785 = vmatpush1.msra.mxu0 0.0
    %786 = vmatprep.subr.mxu0 0.0
    %787 = vmatpush1.msra.mxu0 0.0
    %788 = vmatprep.subr.mxu0 0.0
    %789 = vmatpush1.msra.mxu0 0.0
    %790 = vmatprep.subr.mxu0 0.0
    %791 = vmatpush1.msra.mxu0 0.0
    %792 = vmatprep.subr.mxu0 0.0
    %793 = vmatpush1.msra.mxu0 0.0
    %794 = vmatprep.subr.mxu0 0.0
    %795 = vmatpush1.msra.mxu0 0.0
    %796 = vmatprep.subr.mxu0 0.0
    %797 = vmatpush1.msra.mxu0 0.0
    %798 = vmatprep.subr.mxu0 0.0
    %799 = vmatpush1.msra.mxu0 0.0
    %800 = vmatprep.subr.mxu0 0.0
    %801 = vmatpush1.msra.mxu0 0.0
    %802 = vmatprep.subr.mxu0 0.0
    %803 = vmatpush1.msra.mxu0 0.0
    %804 = vmatprep.subr.mxu0 0.0
    %805 = vmatpush1.msra.mxu0 %v617
    %806 = vmatprep.subr.mxu0 0.0
    %807 = vmatpush1.msra.mxu0 %v612
    %808 = vmatprep.subr.mxu0 0.0
    %809 = vmatpush1.msra.mxu0 %v607
    %810 = vmatprep.subr.mxu0 0.0
    %811 = vmatpush2.msra.mxu0 0.0
    %812 = vmatprep.subr.mxu0 0.0
    %813 = vmatpush2.msra.mxu0 0.0
    %814 = vmatprep.subr.mxu0 0.0
    %815 = vmatpush2.msra.mxu0 0.0
    %816 = vmatprep.subr.mxu0 0.0
    %817 = vmatpush2.msra.mxu0 0.0
    %818 = vmatprep.subr.mxu0 0.0
    %819 = vmatpush2.msra.mxu0 0.0
    %820 = vmatprep.subr.mxu0 0.0
    %821 = vmatpush2.msra.mxu0 0.0
    %822 = vmatprep.subr.mxu0 0.0
    %823 = vmatpush2.msra.mxu0 0.0
    %824 = vmatprep.subr.mxu0 0.0
    %825 = vmatpush2.msra.mxu0 0.0
    %826 = vmatprep.subr.mxu0 0.0
    %827 = vmatpush2.msra.mxu0 0.0
    %828 = vmatprep.subr.mxu0 0.0
    %829 = vmatpush2.msra.mxu0 0.0
    %830 = vmatprep.subr.mxu0 0.0
    %831 = vmatpush2.msra.mxu0 0.0
    %832 = vmatprep.subr.mxu0 0.0
    %833 = vmatpush2.msra.mxu0 0.0
    %834 = vmatprep.subr.mxu0 0.0
    %835 = vmatpush2.msra.mxu0 0.0
    %836 = vmatprep.subr.mxu0 0.0
    %837 = vmatpush2.msra.mxu0 0.0
    %838 = vmatprep.subr.mxu0 0.0
    %839 = vmatpush2.msra.mxu0 0.0
    %840 = vmatprep.subr.mxu0 0.0
    %841 = vmatpush2.msra.mxu0 0.0
    %842 = vmatprep.mubr.f32.mxu0 0.0
    %843 = vmatmul.mubr.f32.gmra.mxu0 %v635
    %v844 = vpop.f32.mrf.mxu0
    %v845 = vadd.f32 0.0, %v844
    %v846 = vpop.f32.mrf.mxu0
    %847 = vdwg.mxu0
    %v848 = vadd.f32 %v704, %v196
    %v849 = vadd.f32 %v706, %v198
    %v850 = vmax.f32 %v848, 0.0
    %v851 = vmax.f32 %v849, 0.0
    %852 = vst [vmem:[#allocation3] sm:$0xff] %v850
    %853 = vst [vmem:[#allocation3 + $0x8] sm:$0xff] %v851
    %v854 = vadd.f32 %v776, %v333
    %v855 = vadd.f32 %v845, %v335
    %v856 = vmax.f32 %v854, 0.0
    %v857 = vmax.f32 %v855, 0.0
    %858 = vst [vmem:[#allocation3 + $0x10] sm:$0xff] %v856
    %859 = vst [vmem:[#allocation3 + $0x18] sm:$0xff] %v857
    %v860 = vld [vmem:[#allocation2 + $0x30] sm:$0xff]
    %v861 = vld [vmem:[#allocation2 + $0x38] sm:$0xff]
    %v862 = vld [vmem:[#allocation2 + $0x40] sm:$0xff]
    %v863 = vld [vmem:[#allocation2 + $0x48] sm:$0xff]
    %v864 = vld [vmem:[#allocation2 + $0x50] sm:$0xff]
    %v865 = vld [vmem:[#allocation2 + $0x58] sm:$0xff]
    %872 = vrot.lane.b32.xlu0 %v860, 96
    %v873 = vpop.permute.xlu0 %872
    %874 = vrot.lane.b32.xlu0 %v861, 96
    %v875 = vpop.permute.xlu0 %874
    %876 = vrot.lane.b32.xlu0 %v862, 96
    %v877 = vpop.permute.xlu0 %876
    %878 = vrot.lane.b32.xlu0 %v863, 96
    %v879 = vpop.permute.xlu0 %878
    %880 = vrot.lane.b32.xlu0 %v864, 96
    %v881 = vpop.permute.xlu0 %880
    %882 = vrot.lane.b32.xlu0 %v865, 96
    %v883 = vpop.permute.xlu0 %882
    %v884 = vsel %vm559, %v873, %v875
    %v885 = vsel %vm559, %v875, %v877
    %v886 = vsel %vm559, %v877, %v879
    %v887 = vsel %vm559, %v879, %v881
    %v888 = vsel %vm559, %v881, %v883
    %889 = vrot.lane.b32.xlu0 %v860, 64
    %v890 = vpop.permute.xlu0 %889
    %891 = vrot.lane.b32.xlu0 %v861, 64
    %v892 = vpop.permute.xlu0 %891
    %893 = vrot.lane.b32.xlu0 %v862, 64
    %v894 = vpop.permute.xlu0 %893
    %895 = vrot.lane.b32.xlu0 %v863, 64
    %v896 = vpop.permute.xlu0 %895
    %897 = vrot.lane.b32.xlu0 %v864, 64
    %v898 = vpop.permute.xlu0 %897
    %899 = vrot.lane.b32.xlu0 %v865, 64
    %v900 = vpop.permute.xlu0 %899
    %v901 = vsel %vm18, %v890, %v892
    %v902 = vsel %vm18, %v892, %v894
    %v903 = vsel %vm18, %v894, %v896
    %v904 = vsel %vm18, %v896, %v898
    %v905 = vsel %vm18, %v898, %v900
    %v906 = vld [vmem:[%s2 + $0x8] sm:$0xff]
    %907 = vrot.lane.b32.xlu0 %v884, 96
    %v908 = vpop.permute.xlu0 %907
    %909 = vrot.lane.b32.xlu0 %v885, 96
    %v910 = vpop.permute.xlu0 %909
    %911 = vrot.lane.b32.xlu0 %v886, 96
    %v912 = vpop.permute.xlu0 %911
    %913 = vrot.lane.b32.xlu0 %v887, 96
    %v914 = vpop.permute.xlu0 %913
    %915 = vrot.lane.b32.xlu0 %v888, 96
    %v916 = vpop.permute.xlu0 %915
    %917 = vrot.lane.b32.xlu0 %v883, 96
    %v918 = vpop.permute.xlu0 %917
    %919 = vrot.lane.b32.xlu0 %v901, 96
    %v920 = vpop.permute.xlu0 %919
    %921 = vrot.lane.b32.xlu0 %v902, 96
    %v922 = vpop.permute.xlu0 %921
    %923 = vrot.lane.b32.xlu0 %v903, 96
    %v924 = vpop.permute.xlu0 %923
    %925 = vrot.lane.b32.xlu0 %v904, 96
    %v926 = vpop.permute.xlu0 %925
    %927 = vrot.lane.b32.xlu0 %v905, 96
    %v928 = vpop.permute.xlu0 %927
    %929 = vrot.lane.b32.xlu0 %v900, 96
    %v930 = vpop.permute.xlu0 %929
    %v931 = vsel %vm559, %v908, %v910
    %v932 = vsel %vm559, %v910, %v912
    %v933 = vsel %vm559, %v912, %v914
    %v934 = vsel %vm559, %v914, %v916
    %v935 = vsel %vm559, %v916, %v918
    %v936 = vsel %vm559, %v920, %v922
    %v937 = vsel %vm559, %v922, %v924
    %v938 = vsel %vm559, %v924, %v926
    %v939 = vsel %vm559, %v926, %v928
    %v940 = vsel %vm559, %v928, %v930
    %v957 = vsel %vm633, %v906, 0
    %959 = vmatprep.subr.mxu0 0.0
    %960 = vmatpush1.msra.mxu0 0.0
    %961 = vmatprep.subr.mxu0 0.0
    %962 = vmatpush1.msra.mxu0 0.0
    %963 = vmatprep.subr.mxu0 0.0
    %964 = vmatpush1.msra.mxu0 0.0
    %965 = vmatprep.subr.mxu0 0.0
    %966 = vmatpush1.msra.mxu0 0.0
    %967 = vmatprep.subr.mxu0 0.0
    %968 = vmatpush1.msra.mxu0 0.0
    %969 = vmatprep.subr.mxu0 0.0
    %970 = vmatpush1.msra.mxu0 0.0
    %971 = vmatprep.subr.mxu0 0.0
    %972 = vmatpush1.msra.mxu0 0.0
    %973 = vmatprep.subr.mxu0 0.0
    %974 = vmatpush1.msra.mxu0 0.0
    %975 = vmatprep.subr.mxu0 0.0
    %976 = vmatpush1.msra.mxu0 0.0
    %977 = vmatprep.subr.mxu0 0.0
    %978 = vmatpush1.msra.mxu0 0.0
    %979 = vmatprep.subr.mxu0 0.0
    %980 = vmatpush1.msra.mxu0 0.0
    %981 = vmatprep.subr.mxu0 0.0
    %982 = vmatpush1.msra.mxu0 0.0
    %983 = vmatprep.subr.mxu0 0.0
    %984 = vmatpush1.msra.mxu0 0.0
    %985 = vmatprep.subr.mxu0 %v937
    %986 = vmatpush1.msra.mxu0 %v936
    %987 = vmatprep.subr.mxu0 %v932
    %988 = vmatpush1.msra.mxu0 %v931
    %989 = vmatprep.subr.mxu0 %v885
    %990 = vmatpush1.msra.mxu0 %v884
    %991 = vmatprep.subr.mxu0 0.0
    %992 = vmatpush2.msra.mxu0 0.0
    %993 = vmatprep.subr.mxu0 0.0
    %994 = vmatpush2.msra.mxu0 0.0
    %995 = vmatprep.subr.mxu0 0.0
    %996 = vmatpush2.msra.mxu0 0.0
    %997 = vmatprep.subr.mxu0 0.0
    %998 = vmatpush2.msra.mxu0 0.0
    %999 = vmatprep.subr.mxu0 0.0
    %1000 = vmatpush2.msra.mxu0 0.0
    %1001 = vmatprep.subr.mxu0 0.0
    %1002 = vmatpush2.msra.mxu0 0.0
    %1003 = vmatprep.subr.mxu0 0.0
    %1004 = vmatpush2.msra.mxu0 0.0
    %1005 = vmatprep.subr.mxu0 0.0
    %1006 = vmatpush2.msra.mxu0 0.0
    %1007 = vmatprep.subr.mxu0 0.0
    %1008 = vmatpush2.msra.mxu0 0.0
    %1009 = vmatprep.subr.mxu0 0.0
    %1010 = vmatpush2.msra.mxu0 0.0
    %1011 = vmatprep.subr.mxu0 0.0
    %1012 = vmatpush2.msra.mxu0 0.0
    %1013 = vmatprep.subr.mxu0 0.0
    %1014 = vmatpush2.msra.mxu0 0.0
    %1015 = vmatprep.subr.mxu0 0.0
    %1016 = vmatpush2.msra.mxu0 0.0
    %1017 = vmatprep.subr.mxu0 0.0
    %1018 = vmatpush2.msra.mxu0 0.0
    %1019 = vmatprep.subr.mxu0 0.0
    %1020 = vmatpush2.msra.mxu0 0.0
    %1021 = vmatprep.subr.mxu0 0.0
    %1022 = vmatpush2.msra.mxu0 0.0
    %1023 = vmatprep.mubr.f32.mxu0 0.0
    %1024 = vmatmul.mubr.f32.gmra.mxu0 %v957
    %v1025 = vpop.f32.mrf.mxu0
    %v1026 = vadd.f32 0.0, %v1025
    %v1027 = vpop.f32.mrf.mxu0
    %v1028 = vadd.f32 0.0, %v1027
    %1029 = vdwg.mxu0
    %1030 = vmatprep.subr.mxu0 0.0
    %1031 = vmatpush1.msra.mxu0 0.0
    %1032 = vmatprep.subr.mxu0 0.0
    %1033 = vmatpush1.msra.mxu0 0.0
    %1034 = vmatprep.subr.mxu0 0.0
    %1035 = vmatpush1.msra.mxu0 0.0
    %1036 = vmatprep.subr.mxu0 0.0
    %1037 = vmatpush1.msra.mxu0 0.0
    %1038 = vmatprep.subr.mxu0 0.0
    %1039 = vmatpush1.msra.mxu0 0.0
    %1040 = vmatprep.subr.mxu0 0.0
    %1041 = vmatpush1.msra.mxu0 0.0
    %1042 = vmatprep.subr.mxu0 0.0
    %1043 = vmatpush1.msra.mxu0 0.0
    %1044 = vmatprep.subr.mxu0 0.0
    %1045 = vmatpush1.msra.mxu0 0.0
    %1046 = vmatprep.subr.mxu0 0.0
    %1047 = vmatpush1.msra.mxu0 0.0
    %1048 = vmatprep.subr.mxu0 0.0
    %1049 = vmatpush1.msra.mxu0 0.0
    %1050 = vmatprep.subr.mxu0 0.0
    %1051 = vmatpush1.msra.mxu0 0.0
    %1052 = vmatprep.subr.mxu0 0.0
    %1053 = vmatpush1.msra.mxu0 0.0
    %1054 = vmatprep.subr.mxu0 0.0
    %1055 = vmatpush1.msra.mxu0 0.0
    %1056 = vmatprep.subr.mxu0 %v939
    %1057 = vmatpush1.msra.mxu0 %v938
    %1058 = vmatprep.subr.mxu0 %v934
    %1059 = vmatpush1.msra.mxu0 %v933
    %1060 = vmatprep.subr.mxu0 %v887
    %1061 = vmatpush1.msra.mxu0 %v886
    %1062 = vmatprep.subr.mxu0 0.0
    %1063 = vmatpush2.msra.mxu0 0.0
    %1064 = vmatprep.subr.mxu0 0.0
    %1065 = vmatpush2.msra.mxu0 0.0
    %1066 = vmatprep.subr.mxu0 0.0
    %1067 = vmatpush2.msra.mxu0 0.0
    %1068 = vmatprep.subr.mxu0 0.0
    %1069 = vmatpush2.msra.mxu0 0.0
    %1070 = vmatprep.subr.mxu0 0.0
    %1071 = vmatpush2.msra.mxu0 0.0
    %1072 = vmatprep.subr.mxu0 0.0
    %1073 = vmatpush2.msra.mxu0 0.0
    %1074 = vmatprep.subr.mxu0 0.0
    %1075 = vmatpush2.msra.mxu0 0.0
    %1076 = vmatprep.subr.mxu0 0.0
    %1077 = vmatpush2.msra.mxu0 0.0
    %1078 = vmatprep.subr.mxu0 0.0
    %1079 = vmatpush2.msra.mxu0 0.0
    %1080 = vmatprep.subr.mxu0 0.0
    %1081 = vmatpush2.msra.mxu0 0.0
    %1082 = vmatprep.subr.mxu0 0.0
    %1083 = vmatpush2.msra.mxu0 0.0
    %1084 = vmatprep.subr.mxu0 0.0
    %1085 = vmatpush2.msra.mxu0 0.0
    %1086 = vmatprep.subr.mxu0 0.0
    %1087 = vmatpush2.msra.mxu0 0.0
    %1088 = vmatprep.subr.mxu0 0.0
    %1089 = vmatpush2.msra.mxu0 0.0
    %1090 = vmatprep.subr.mxu0 0.0
    %1091 = vmatpush2.msra.mxu0 0.0
    %1092 = vmatprep.subr.mxu0 0.0
    %1093 = vmatpush2.msra.mxu0 0.0
    %1094 = vmatprep.mubr.f32.mxu0 0.0
    %1095 = vmatmul.mubr.f32.gmra.mxu0 %v957
    %v1096 = vpop.f32.mrf.mxu0
    %v1097 = vpop.f32.mrf.mxu0
    %v1098 = vadd.f32 0.0, %v1097
    %1099 = vdwg.mxu0
    %1100 = vmatprep.subr.mxu0 0.0
    %1101 = vmatpush1.msra.mxu0 0.0
    %1102 = vmatprep.subr.mxu0 0.0
    %1103 = vmatpush1.msra.mxu0 0.0
    %1104 = vmatprep.subr.mxu0 0.0
    %1105 = vmatpush1.msra.mxu0 0.0
    %1106 = vmatprep.subr.mxu0 0.0
    %1107 = vmatpush1.msra.mxu0 0.0
    %1108 = vmatprep.subr.mxu0 0.0
    %1109 = vmatpush1.msra.mxu0 0.0
    %1110 = vmatprep.subr.mxu0 0.0
    %1111 = vmatpush1.msra.mxu0 0.0
    %1112 = vmatprep.subr.mxu0 0.0
    %1113 = vmatpush1.msra.mxu0 0.0
    %1114 = vmatprep.subr.mxu0 0.0
    %1115 = vmatpush1.msra.mxu0 0.0
    %1116 = vmatprep.subr.mxu0 0.0
    %1117 = vmatpush1.msra.mxu0 0.0
    %1118 = vmatprep.subr.mxu0 0.0
    %1119 = vmatpush1.msra.mxu0 0.0
    %1120 = vmatprep.subr.mxu0 0.0
    %1121 = vmatpush1.msra.mxu0 0.0
    %1122 = vmatprep.subr.mxu0 0.0
    %1123 = vmatpush1.msra.mxu0 0.0
    %1124 = vmatprep.subr.mxu0 0.0
    %1125 = vmatpush1.msra.mxu0 0.0
    %1126 = vmatprep.subr.mxu0 0.0
    %1127 = vmatpush1.msra.mxu0 %v940
    %1128 = vmatprep.subr.mxu0 0.0
    %1129 = vmatpush1.msra.mxu0 %v935
    %1130 = vmatprep.subr.mxu0 0.0
    %1131 = vmatpush1.msra.mxu0 %v888
    %1132 = vmatprep.subr.mxu0 0.0
    %1133 = vmatpush2.msra.mxu0 0.0
    %1134 = vmatprep.subr.mxu0 0.0
    %1135 = vmatpush2.msra.mxu0 0.0
    %1136 = vmatprep.subr.mxu0 0.0
    %1137 = vmatpush2.msra.mxu0 0.0
    %1138 = vmatprep.subr.mxu0 0.0
    %1139 = vmatpush2.msra.mxu0 0.0
    %1140 = vmatprep.subr.mxu0 0.0
    %1141 = vmatpush2.msra.mxu0 0.0
    %1142 = vmatprep.subr.mxu0 0.0
    %1143 = vmatpush2.msra.mxu0 0.0
    %1144 = vmatprep.subr.mxu0 0.0
    %1145 = vmatpush2.msra.mxu0 0.0
    %1146 = vmatprep.subr.mxu0 0.0
    %1147 = vmatpush2.msra.mxu0 0.0
    %1148 = vmatprep.subr.mxu0 0.0
    %1149 = vmatpush2.msra.mxu0 0.0
    %1150 = vmatprep.subr.mxu0 0.0
    %1151 = vmatpush2.msra.mxu0 0.0
    %1152 = vmatprep.subr.mxu0 0.0
    %1153 = vmatpush2.msra.mxu0 0.0
    %1154 = vmatprep.subr.mxu0 0.0
    %1155 = vmatpush2.msra.mxu0 0.0
    %1156 = vmatprep.subr.mxu0 0.0
    %1157 = vmatpush2.msra.mxu0 0.0
    %1158 = vmatprep.subr.mxu0 0.0
    %1159 = vmatpush2.msra.mxu0 0.0
    %1160 = vmatprep.subr.mxu0 0.0
    %1161 = vmatpush2.msra.mxu0 0.0
    %1162 = vmatprep.subr.mxu0 0.0
    %1163 = vmatpush2.msra.mxu0 0.0
    %1164 = vmatprep.mubr.f32.mxu0 0.0
    %1165 = vmatmul.mubr.f32.gmra.mxu0 %v957
    %v1166 = vpop.f32.mrf.mxu0
    %v1167 = vadd.f32 0.0, %v1166
    %v1168 = vpop.f32.mrf.mxu0
    %1169 = vdwg.mxu0
    %v1170 = vadd.f32 %v1026, %v202
    %v1171 = vadd.f32 %v1028, %v204
    %v1172 = vmax.f32 %v1170, 0.0
    %v1173 = vmax.f32 %v1171, 0.0
    %1174 = vst [vmem:[#allocation3 + $0x20] sm:$0xff] %v1172
    %1175 = vst [vmem:[#allocation3 + $0x28] sm:$0xff] %v1173
    %v1176 = vadd.f32 %v1098, %v339
    %v1177 = vadd.f32 %v1167, %v341
    %v1178 = vmax.f32 %v1176, 0.0
    %v1179 = vmax.f32 %v1177, 0.0
    %1180 = vst [vmem:[#allocation3 + $0x30] sm:$0xff] %v1178
    %1181 = vst [vmem:[#allocation3 + $0x38] sm:$0xff] %v1179
    %v1182 = vld [vmem:[#allocation2 + $0x60] sm:$0xff]
    %v1183 = vld [vmem:[#allocation2 + $0x68] sm:$0xff]
    %v1184 = vld [vmem:[#allocation2 + $0x70] sm:$0xff]
    %v1185 = vld [vmem:[#allocation2 + $0x78] sm:$0xff]
    %v1186 = vld [vmem:[#allocation2 + $0x80] sm:$0xff]
    %v1187 = vld [vmem:[#allocation2 + $0x88] sm:$0xff]
    %1194 = vrot.lane.b32.xlu0 %v1182, 80
    %v1195 = vpop.permute.xlu0 %1194
    %1196 = vrot.lane.b32.xlu0 %v1183, 80
    %v1197 = vpop.permute.xlu0 %1196
    %1198 = vrot.lane.b32.xlu0 %v1184, 80
    %v1199 = vpop.permute.xlu0 %1198
    %1200 = vrot.lane.b32.xlu0 %v1185, 80
    %v1201 = vpop.permute.xlu0 %1200
    %1202 = vrot.lane.b32.xlu0 %v1186, 80
    %v1203 = vpop.permute.xlu0 %1202
    %1204 = vrot.lane.b32.xlu0 %v1187, 80
    %v1205 = vpop.permute.xlu0 %1204
    %v1206 = vsel %vm602, %v1195, %v1197
    %v1207 = vsel %vm602, %v1197, %v1199
    %v1208 = vsel %vm602, %v1199, %v1201
    %v1209 = vsel %vm602, %v1201, %v1203
    %v1210 = vsel %vm602, %v1203, %v1205
    %1211 = vrot.lane.b32.xlu0 %v1182, 32
    %v1212 = vpop.permute.xlu0 %1211
    %1213 = vrot.lane.b32.xlu0 %v1183, 32
    %v1214 = vpop.permute.xlu0 %1213
    %1215 = vrot.lane.b32.xlu0 %v1184, 32
    %v1216 = vpop.permute.xlu0 %1215
    %1217 = vrot.lane.b32.xlu0 %v1185, 32
    %v1218 = vpop.permute.xlu0 %1217
    %1219 = vrot.lane.b32.xlu0 %v1186, 32
    %v1220 = vpop.permute.xlu0 %1219
    %1221 = vrot.lane.b32.xlu0 %v1187, 32
    %v1222 = vpop.permute.xlu0 %1221
    %vm1223 = vcmask 261120
    %v1224 = vsel %vm1223, %v1212, %v1214
    %v1225 = vsel %vm1223, %v1214, %v1216
    %v1226 = vsel %vm1223, %v1216, %v1218
    %v1227 = vsel %vm1223, %v1218, %v1220
    %v1228 = vsel %vm1223, %v1220, %v1222
    %v1229 = vld [vmem:[%s2 + $0x10] sm:$0xff]
    %1230 = vrot.lane.b32.xlu0 %v1182, 112
    %v1231 = vpop.permute.xlu0 %1230
    %1232 = vrot.lane.b32.xlu0 %v1183, 112
    %v1233 = vpop.permute.xlu0 %1232
    %1234 = vrot.lane.b32.xlu0 %v1184, 112
    %v1235 = vpop.permute.xlu0 %1234
    %1236 = vrot.lane.b32.xlu0 %v1185, 112
    %v1237 = vpop.permute.xlu0 %1236
    %1238 = vrot.lane.b32.xlu0 %v1186, 112
    %v1239 = vpop.permute.xlu0 %1238
    %1240 = vrot.lane.b32.xlu0 %v1187, 112
    %v1241 = vpop.permute.xlu0 %1240
    %1242 = vrot.lane.b32.xlu0 %v1206, 112
    %v1243 = vpop.permute.xlu0 %1242
    %1244 = vrot.lane.b32.xlu0 %v1207, 112
    %v1245 = vpop.permute.xlu0 %1244
    %1246 = vrot.lane.b32.xlu0 %v1208, 112
    %v1247 = vpop.permute.xlu0 %1246
    %1248 = vrot.lane.b32.xlu0 %v1209, 112
    %v1249 = vpop.permute.xlu0 %1248
    %1250 = vrot.lane.b32.xlu0 %v1210, 112
    %v1251 = vpop.permute.xlu0 %1250
    %1252 = vrot.lane.b32.xlu0 %v1205, 112
    %v1253 = vpop.permute.xlu0 %1252
    %1254 = vrot.lane.b32.xlu0 %v1224, 112
    %v1255 = vpop.permute.xlu0 %1254
    %1256 = vrot.lane.b32.xlu0 %v1225, 112
    %v1257 = vpop.permute.xlu0 %1256
    %1258 = vrot.lane.b32.xlu0 %v1226, 112
    %v1259 = vpop.permute.xlu0 %1258
    %1260 = vrot.lane.b32.xlu0 %v1227, 112
    %v1261 = vpop.permute.xlu0 %1260
    %1262 = vrot.lane.b32.xlu0 %v1228, 112
    %v1263 = vpop.permute.xlu0 %1262
    %1264 = vrot.lane.b32.xlu0 %v1222, 112
    %v1265 = vpop.permute.xlu0 %1264
    %v1266 = vsel %vm541, %v1231, %v1233
    %v1267 = vsel %vm541, %v1233, %v1235
    %v1268 = vsel %vm541, %v1235, %v1237
    %v1269 = vsel %vm541, %v1237, %v1239
    %v1270 = vsel %vm541, %v1239, %v1241
    %v1271 = vsel %vm541, %v1243, %v1245
    %v1272 = vsel %vm541, %v1245, %v1247
    %v1273 = vsel %vm541, %v1247, %v1249
    %v1274 = vsel %vm541, %v1249, %v1251
    %v1275 = vsel %vm541, %v1251, %v1253
    %v1276 = vsel %vm541, %v1255, %v1257
    %v1277 = vsel %vm541, %v1257, %v1259
    %v1278 = vsel %vm541, %v1259, %v1261
    %v1279 = vsel %vm541, %v1261, %v1263
    %v1280 = vsel %vm541, %v1263, %v1265
    %v1297 = vsel %vm633, %v1229, 0
    %1299 = vmatprep.subr.mxu0 0.0
    %1300 = vmatpush1.msra.mxu0 0.0
    %1301 = vmatprep.subr.mxu0 0.0
    %1302 = vmatpush1.msra.mxu0 0.0
    %1303 = vmatprep.subr.mxu0 0.0
    %1304 = vmatpush1.msra.mxu0 0.0
    %1305 = vmatprep.subr.mxu0 0.0
    %1306 = vmatpush1.msra.mxu0 0.0
    %1307 = vmatprep.subr.mxu0 0.0
    %1308 = vmatpush1.msra.mxu0 0.0
    %1309 = vmatprep.subr.mxu0 0.0
    %1310 = vmatpush1.msra.mxu0 0.0
    %1311 = vmatprep.subr.mxu0 0.0
    %1312 = vmatpush1.msra.mxu0 0.0
    %1313 = vmatprep.subr.mxu0 0.0
    %1314 = vmatpush1.msra.mxu0 0.0
    %1315 = vmatprep.subr.mxu0 0.0
    %1316 = vmatpush1.msra.mxu0 0.0
    %1317 = vmatprep.subr.mxu0 0.0
    %1318 = vmatpush1.msra.mxu0 0.0
    %1319 = vmatprep.subr.mxu0 0.0
    %1320 = vmatpush1.msra.mxu0 0.0
    %1321 = vmatprep.subr.mxu0 0.0
    %1322 = vmatpush1.msra.mxu0 0.0
    %1323 = vmatprep.subr.mxu0 0.0
    %1324 = vmatpush1.msra.mxu0 0.0
    %1325 = vmatprep.subr.mxu0 %v1277
    %1326 = vmatpush1.msra.mxu0 %v1276
    %1327 = vmatprep.subr.mxu0 %v1272
    %1328 = vmatpush1.msra.mxu0 %v1271
    %1329 = vmatprep.subr.mxu0 %v1267
    %1330 = vmatpush1.msra.mxu0 %v1266
    %1331 = vmatprep.subr.mxu0 0.0
    %1332 = vmatpush2.msra.mxu0 0.0
    %1333 = vmatprep.subr.mxu0 0.0
    %1334 = vmatpush2.msra.mxu0 0.0
    %1335 = vmatprep.subr.mxu0 0.0
    %1336 = vmatpush2.msra.mxu0 0.0
    %1337 = vmatprep.subr.mxu0 0.0
    %1338 = vmatpush2.msra.mxu0 0.0
    %1339 = vmatprep.subr.mxu0 0.0
    %1340 = vmatpush2.msra.mxu0 0.0
    %1341 = vmatprep.subr.mxu0 0.0
    %1342 = vmatpush2.msra.mxu0 0.0
    %1343 = vmatprep.subr.mxu0 0.0
    %1344 = vmatpush2.msra.mxu0 0.0
    %1345 = vmatprep.subr.mxu0 0.0
    %1346 = vmatpush2.msra.mxu0 0.0
    %1347 = vmatprep.subr.mxu0 0.0
    %1348 = vmatpush2.msra.mxu0 0.0
    %1349 = vmatprep.subr.mxu0 0.0
    %1350 = vmatpush2.msra.mxu0 0.0
    %1351 = vmatprep.subr.mxu0 0.0
    %1352 = vmatpush2.msra.mxu0 0.0
    %1353 = vmatprep.subr.mxu0 0.0
    %1354 = vmatpush2.msra.mxu0 0.0
    %1355 = vmatprep.subr.mxu0 0.0
    %1356 = vmatpush2.msra.mxu0 0.0
    %1357 = vmatprep.subr.mxu0 0.0
    %1358 = vmatpush2.msra.mxu0 0.0
    %1359 = vmatprep.subr.mxu0 0.0
    %1360 = vmatpush2.msra.mxu0 0.0
    %1361 = vmatprep.subr.mxu0 0.0
    %1362 = vmatpush2.msra.mxu0 0.0
    %1363 = vmatprep.mubr.f32.mxu0 0.0
    %1364 = vmatmul.mubr.f32.gmra.mxu0 %v1297
    %v1365 = vpop.f32.mrf.mxu0
    %v1366 = vadd.f32 0.0, %v1365
    %v1367 = vpop.f32.mrf.mxu0
    %v1368 = vadd.f32 0.0, %v1367
    %1369 = vdwg.mxu0
    %1370 = vmatprep.subr.mxu0 0.0
    %1371 = vmatpush1.msra.mxu0 0.0
    %1372 = vmatprep.subr.mxu0 0.0
    %1373 = vmatpush1.msra.mxu0 0.0
    %1374 = vmatprep.subr.mxu0 0.0
    %1375 = vmatpush1.msra.mxu0 0.0
    %1376 = vmatprep.subr.mxu0 0.0
    %1377 = vmatpush1.msra.mxu0 0.0
    %1378 = vmatprep.subr.mxu0 0.0
    %1379 = vmatpush1.msra.mxu0 0.0
    %1380 = vmatprep.subr.mxu0 0.0
    %1381 = vmatpush1.msra.mxu0 0.0
    %1382 = vmatprep.subr.mxu0 0.0
    %1383 = vmatpush1.msra.mxu0 0.0
    %1384 = vmatprep.subr.mxu0 0.0
    %1385 = vmatpush1.msra.mxu0 0.0
    %1386 = vmatprep.subr.mxu0 0.0
    %1387 = vmatpush1.msra.mxu0 0.0
    %1388 = vmatprep.subr.mxu0 0.0
    %1389 = vmatpush1.msra.mxu0 0.0
    %1390 = vmatprep.subr.mxu0 0.0
    %1391 = vmatpush1.msra.mxu0 0.0
    %1392 = vmatprep.subr.mxu0 0.0
    %1393 = vmatpush1.msra.mxu0 0.0
    %1394 = vmatprep.subr.mxu0 0.0
    %1395 = vmatpush1.msra.mxu0 0.0
    %1396 = vmatprep.subr.mxu0 %v1279
    %1397 = vmatpush1.msra.mxu0 %v1278
    %1398 = vmatprep.subr.mxu0 %v1274
    %1399 = vmatpush1.msra.mxu0 %v1273
    %1400 = vmatprep.subr.mxu0 %v1269
    %1401 = vmatpush1.msra.mxu0 %v1268
    %1402 = vmatprep.subr.mxu0 0.0
    %1403 = vmatpush2.msra.mxu0 0.0
    %1404 = vmatprep.subr.mxu0 0.0
    %1405 = vmatpush2.msra.mxu0 0.0
    %1406 = vmatprep.subr.mxu0 0.0
    %1407 = vmatpush2.msra.mxu0 0.0
    %1408 = vmatprep.subr.mxu0 0.0
    %1409 = vmatpush2.msra.mxu0 0.0
    %1410 = vmatprep.subr.mxu0 0.0
    %1411 = vmatpush2.msra.mxu0 0.0
    %1412 = vmatprep.subr.mxu0 0.0
    %1413 = vmatpush2.msra.mxu0 0.0
    %1414 = vmatprep.subr.mxu0 0.0
    %1415 = vmatpush2.msra.mxu0 0.0
    %1416 = vmatprep.subr.mxu0 0.0
    %1417 = vmatpush2.msra.mxu0 0.0
    %1418 = vmatprep.subr.mxu0 0.0
    %1419 = vmatpush2.msra.mxu0 0.0
    %1420 = vmatprep.subr.mxu0 0.0
    %1421 = vmatpush2.msra.mxu0 0.0
    %1422 = vmatprep.subr.mxu0 0.0
    %1423 = vmatpush2.msra.mxu0 0.0
    %1424 = vmatprep.subr.mxu0 0.0
    %1425 = vmatpush2.msra.mxu0 0.0
    %1426 = vmatprep.subr.mxu0 0.0
    %1427 = vmatpush2.msra.mxu0 0.0
    %1428 = vmatprep.subr.mxu0 0.0
    %1429 = vmatpush2.msra.mxu0 0.0
    %1430 = vmatprep.subr.mxu0 0.0
    %1431 = vmatpush2.msra.mxu0 0.0
    %1432 = vmatprep.subr.mxu0 0.0
    %1433 = vmatpush2.msra.mxu0 0.0
    %1434 = vmatprep.mubr.f32.mxu0 0.0
    %1435 = vmatmul.mubr.f32.gmra.mxu0 %v1297
    %v1436 = vpop.f32.mrf.mxu0
    %v1437 = vpop.f32.mrf.mxu0
    %v1438 = vadd.f32 0.0, %v1437
    %1439 = vdwg.mxu0
    %1440 = vmatprep.subr.mxu0 0.0
    %1441 = vmatpush1.msra.mxu0 0.0
    %1442 = vmatprep.subr.mxu0 0.0
    %1443 = vmatpush1.msra.mxu0 0.0
    %1444 = vmatprep.subr.mxu0 0.0
    %1445 = vmatpush1.msra.mxu0 0.0
    %1446 = vmatprep.subr.mxu0 0.0
    %1447 = vmatpush1.msra.mxu0 0.0
    %1448 = vmatprep.subr.mxu0 0.0
    %1449 = vmatpush1.msra.mxu0 0.0
    %1450 = vmatprep.subr.mxu0 0.0
    %1451 = vmatpush1.msra.mxu0 0.0
    %1452 = vmatprep.subr.mxu0 0.0
    %1453 = vmatpush1.msra.mxu0 0.0
    %1454 = vmatprep.subr.mxu0 0.0
    %1455 = vmatpush1.msra.mxu0 0.0
    %1456 = vmatprep.subr.mxu0 0.0
    %1457 = vmatpush1.msra.mxu0 0.0
    %1458 = vmatprep.subr.mxu0 0.0
    %1459 = vmatpush1.msra.mxu0 0.0
    %1460 = vmatprep.subr.mxu0 0.0
    %1461 = vmatpush1.msra.mxu0 0.0
    %1462 = vmatprep.subr.mxu0 0.0
    %1463 = vmatpush1.msra.mxu0 0.0
    %1464 = vmatprep.subr.mxu0 0.0
    %1465 = vmatpush1.msra.mxu0 0.0
    %1466 = vmatprep.subr.mxu0 0.0
    %1467 = vmatpush1.msra.mxu0 %v1280
    %1468 = vmatprep.subr.mxu0 0.0
    %1469 = vmatpush1.msra.mxu0 %v1275
    %1470 = vmatprep.subr.mxu0 0.0
    %1471 = vmatpush1.msra.mxu0 %v1270
    %1472 = vmatprep.subr.mxu0 0.0
    %1473 = vmatpush2.msra.mxu0 0.0
    %1474 = vmatprep.subr.mxu0 0.0
    %1475 = vmatpush2.msra.mxu0 0.0
    %1476 = vmatprep.subr.mxu0 0.0
    %1477 = vmatpush2.msra.mxu0 0.0
    %1478 = vmatprep.subr.mxu0 0.0
    %1479 = vmatpush2.msra.mxu0 0.0
    %1480 = vmatprep.subr.mxu0 0.0
    %1481 = vmatpush2.msra.mxu0 0.0
    %1482 = vmatprep.subr.mxu0 0.0
    %1483 = vmatpush2.msra.mxu0 0.0
    %1484 = vmatprep.subr.mxu0 0.0
    %1485 = vmatpush2.msra.mxu0 0.0
    %1486 = vmatprep.subr.mxu0 0.0
    %1487 = vmatpush2.msra.mxu0 0.0
    %1488 = vmatprep.subr.mxu0 0.0
    %1489 = vmatpush2.msra.mxu0 0.0
    %1490 = vmatprep.subr.mxu0 0.0
    %1491 = vmatpush2.msra.mxu0 0.0
    %1492 = vmatprep.subr.mxu0 0.0
    %1493 = vmatpush2.msra.mxu0 0.0
    %1494 = vmatprep.subr.mxu0 0.0
    %1495 = vmatpush2.msra.mxu0 0.0
    %1496 = vmatprep.subr.mxu0 0.0
    %1497 = vmatpush2.msra.mxu0 0.0
    %1498 = vmatprep.subr.mxu0 0.0
    %1499 = vmatpush2.msra.mxu0 0.0
    %1500 = vmatprep.subr.mxu0 0.0
    %1501 = vmatpush2.msra.mxu0 0.0
    %1502 = vmatprep.subr.mxu0 0.0
    %1503 = vmatpush2.msra.mxu0 0.0
    %1504 = vmatprep.mubr.f32.mxu0 0.0
    %1505 = vmatmul.mubr.f32.gmra.mxu0 %v1297
    %v1506 = vpop.f32.mrf.mxu0
    %v1507 = vadd.f32 0.0, %v1506
    %v1508 = vpop.f32.mrf.mxu0
    %1509 = vdwg.mxu0
    %v1510 = vadd.f32 %v1366, %v208
    %v1511 = vadd.f32 %v1368, %v210
    %v1512 = vmax.f32 %v1510, 0.0
    %v1513 = vmax.f32 %v1511, 0.0
    %1514 = vst [vmem:[#allocation3 + $0x40] sm:$0xff] %v1512
    %1515 = vst [vmem:[#allocation3 + $0x48] sm:$0xff] %v1513
    %v1516 = vadd.f32 %v1438, %v345
    %v1517 = vadd.f32 %v1507, %v347
    %v1518 = vmax.f32 %v1516, 0.0
    %v1519 = vmax.f32 %v1517, 0.0
    %1520 = vst [vmem:[#allocation3 + $0x50] sm:$0xff] %v1518
    %1521 = vst [vmem:[#allocation3 + $0x58] sm:$0xff] %v1519
    %v1522 = vld [vmem:[#allocation2 + $0x90] sm:$0xff]
    %v1523 = vld [vmem:[#allocation2 + $0x98] sm:$0xff]
    %v1524 = vld [vmem:[#allocation2 + $0xa0] sm:$0xff]
    %v1525 = vld [vmem:[#allocation2 + $0xa8] sm:$0xff]
    %v1526 = vld [vmem:[#allocation2 + $0xb0] sm:$0xff]
    %v1527 = vld [vmem:[#allocation2 + $0xb8] sm:$0xff]
    %1534 = vrot.lane.b32.xlu0 %v1522, 64
    %v1535 = vpop.permute.xlu0 %1534
    %1536 = vrot.lane.b32.xlu0 %v1523, 64
    %v1537 = vpop.permute.xlu0 %1536
    %1538 = vrot.lane.b32.xlu0 %v1524, 64
    %v1539 = vpop.permute.xlu0 %1538
    %1540 = vrot.lane.b32.xlu0 %v1525, 64
    %v1541 = vpop.permute.xlu0 %1540
    %1542 = vrot.lane.b32.xlu0 %v1526, 64
    %v1543 = vpop.permute.xlu0 %1542
    %1544 = vrot.lane.b32.xlu0 %v1527, 64
    %v1545 = vpop.permute.xlu0 %1544
    %v1546 = vsel %vm18, %v1535, %v1537
    %v1547 = vsel %vm18, %v1537, %v1539
    %v1548 = vsel %vm18, %v1539, %v1541
    %v1549 = vsel %vm18, %v1541, %v1543
    %v1550 = vsel %vm18, %v1543, %v1545
    %v1556 = vld [vmem:[%s2 + $0x18] sm:$0xff]
    %v1558 = vsel %vm633, %v1556, 0
    %1560 = vmatprep.subr.mxu0 0.0
    %1561 = vmatpush1.msra.mxu0 0.0
    %1562 = vmatprep.subr.mxu0 0.0
    %1563 = vmatpush1.msra.mxu0 0.0
    %1564 = vmatprep.subr.mxu0 0.0
    %1565 = vmatpush1.msra.mxu0 0.0
    %1566 = vmatprep.subr.mxu0 0.0
    %1567 = vmatpush1.msra.mxu0 0.0
    %1568 = vmatprep.subr.mxu0 0.0
    %1569 = vmatpush1.msra.mxu0 0.0
    %1570 = vmatprep.subr.mxu0 0.0
    %1571 = vmatpush1.msra.mxu0 0.0
    %1572 = vmatprep.subr.mxu0 0.0
    %1573 = vmatpush1.msra.mxu0 0.0
    %1574 = vmatprep.subr.mxu0 0.0
    %1575 = vmatpush1.msra.mxu0 0.0
    %1576 = vmatprep.subr.mxu0 0.0
    %1577 = vmatpush1.msra.mxu0 0.0
    %1578 = vmatprep.subr.mxu0 0.0
    %1579 = vmatpush1.msra.mxu0 0.0
    %1580 = vmatprep.subr.mxu0 0.0
    %1581 = vmatpush1.msra.mxu0 0.0
    %1582 = vmatprep.subr.mxu0 0.0
    %1583 = vmatpush1.msra.mxu0 0.0
    %1584 = vmatprep.subr.mxu0 0.0
    %1585 = vmatpush1.msra.mxu0 0.0
    %1586 = vmatprep.subr.mxu0 %v1524
    %1587 = vmatpush1.msra.mxu0 %v1523
    %1588 = vmatprep.subr.mxu0 %v1547
    %1589 = vmatpush1.msra.mxu0 %v1546
    %1590 = vmatprep.subr.mxu0 %v1523
    %1591 = vmatpush1.msra.mxu0 %v1522
    %1592 = vmatprep.subr.mxu0 0.0
    %1593 = vmatpush2.msra.mxu0 0.0
    %1594 = vmatprep.subr.mxu0 0.0
    %1595 = vmatpush2.msra.mxu0 0.0
    %1596 = vmatprep.subr.mxu0 0.0
    %1597 = vmatpush2.msra.mxu0 0.0
    %1598 = vmatprep.subr.mxu0 0.0
    %1599 = vmatpush2.msra.mxu0 0.0
    %1600 = vmatprep.subr.mxu0 0.0
    %1601 = vmatpush2.msra.mxu0 0.0
    %1602 = vmatprep.subr.mxu0 0.0
    %1603 = vmatpush2.msra.mxu0 0.0
    %1604 = vmatprep.subr.mxu0 0.0
    %1605 = vmatpush2.msra.mxu0 0.0
    %1606 = vmatprep.subr.mxu0 0.0
    %1607 = vmatpush2.msra.mxu0 0.0
    %1608 = vmatprep.subr.mxu0 0.0
    %1609 = vmatpush2.msra.mxu0 0.0
    %1610 = vmatprep.subr.mxu0 0.0
    %1611 = vmatpush2.msra.mxu0 0.0
    %1612 = vmatprep.subr.mxu0 0.0
    %1613 = vmatpush2.msra.mxu0 0.0
    %1614 = vmatprep.subr.mxu0 0.0
    %1615 = vmatpush2.msra.mxu0 0.0
    %1616 = vmatprep.subr.mxu0 0.0
    %1617 = vmatpush2.msra.mxu0 0.0
    %1618 = vmatprep.subr.mxu0 0.0
    %1619 = vmatpush2.msra.mxu0 0.0
    %1620 = vmatprep.subr.mxu0 0.0
    %1621 = vmatpush2.msra.mxu0 0.0
    %1622 = vmatprep.subr.mxu0 0.0
    %1623 = vmatpush2.msra.mxu0 0.0
    %1624 = vmatprep.mubr.f32.mxu0 0.0
    %1625 = vmatmul.mubr.f32.gmra.mxu0 %v1558
    %v1626 = vpop.f32.mrf.mxu0
    %v1627 = vadd.f32 0.0, %v1626
    %v1628 = vpop.f32.mrf.mxu0
    %v1629 = vadd.f32 0.0, %v1628
    %1630 = vdwg.mxu0
    %1631 = vmatprep.subr.mxu0 0.0
    %1632 = vmatpush1.msra.mxu0 0.0
    %1633 = vmatprep.subr.mxu0 0.0
    %1634 = vmatpush1.msra.mxu0 0.0
    %1635 = vmatprep.subr.mxu0 0.0
    %1636 = vmatpush1.msra.mxu0 0.0
    %1637 = vmatprep.subr.mxu0 0.0
    %1638 = vmatpush1.msra.mxu0 0.0
    %1639 = vmatprep.subr.mxu0 0.0
    %1640 = vmatpush1.msra.mxu0 0.0
    %1641 = vmatprep.subr.mxu0 0.0
    %1642 = vmatpush1.msra.mxu0 0.0
    %1643 = vmatprep.subr.mxu0 0.0
    %1644 = vmatpush1.msra.mxu0 0.0
    %1645 = vmatprep.subr.mxu0 0.0
    %1646 = vmatpush1.msra.mxu0 0.0
    %1647 = vmatprep.subr.mxu0 0.0
    %1648 = vmatpush1.msra.mxu0 0.0
    %1649 = vmatprep.subr.mxu0 0.0
    %1650 = vmatpush1.msra.mxu0 0.0
    %1651 = vmatprep.subr.mxu0 0.0
    %1652 = vmatpush1.msra.mxu0 0.0
    %1653 = vmatprep.subr.mxu0 0.0
    %1654 = vmatpush1.msra.mxu0 0.0
    %1655 = vmatprep.subr.mxu0 0.0
    %1656 = vmatpush1.msra.mxu0 0.0
    %1657 = vmatprep.subr.mxu0 %v1526
    %1658 = vmatpush1.msra.mxu0 %v1525
    %1659 = vmatprep.subr.mxu0 %v1549
    %1660 = vmatpush1.msra.mxu0 %v1548
    %1661 = vmatprep.subr.mxu0 %v1525
    %1662 = vmatpush1.msra.mxu0 %v1524
    %1663 = vmatprep.subr.mxu0 0.0
    %1664 = vmatpush2.msra.mxu0 0.0
    %1665 = vmatprep.subr.mxu0 0.0
    %1666 = vmatpush2.msra.mxu0 0.0
    %1667 = vmatprep.subr.mxu0 0.0
    %1668 = vmatpush2.msra.mxu0 0.0
    %1669 = vmatprep.subr.mxu0 0.0
    %1670 = vmatpush2.msra.mxu0 0.0
    %1671 = vmatprep.subr.mxu0 0.0
    %1672 = vmatpush2.msra.mxu0 0.0
    %1673 = vmatprep.subr.mxu0 0.0
    %1674 = vmatpush2.msra.mxu0 0.0
    %1675 = vmatprep.subr.mxu0 0.0
    %1676 = vmatpush2.msra.mxu0 0.0
    %1677 = vmatprep.subr.mxu0 0.0
    %1678 = vmatpush2.msra.mxu0 0.0
    %1679 = vmatprep.subr.mxu0 0.0
    %1680 = vmatpush2.msra.mxu0 0.0
    %1681 = vmatprep.subr.mxu0 0.0
    %1682 = vmatpush2.msra.mxu0 0.0
    %1683 = vmatprep.subr.mxu0 0.0
    %1684 = vmatpush2.msra.mxu0 0.0
    %1685 = vmatprep.subr.mxu0 0.0
    %1686 = vmatpush2.msra.mxu0 0.0
    %1687 = vmatprep.subr.mxu0 0.0
    %1688 = vmatpush2.msra.mxu0 0.0
    %1689 = vmatprep.subr.mxu0 0.0
    %1690 = vmatpush2.msra.mxu0 0.0
    %1691 = vmatprep.subr.mxu0 0.0
    %1692 = vmatpush2.msra.mxu0 0.0
    %1693 = vmatprep.subr.mxu0 0.0
    %1694 = vmatpush2.msra.mxu0 0.0
    %1695 = vmatprep.mubr.f32.mxu0 0.0
    %1696 = vmatmul.mubr.f32.gmra.mxu0 %v1558
    %v1697 = vpop.f32.mrf.mxu0
    %v1698 = vpop.f32.mrf.mxu0
    %v1699 = vadd.f32 0.0, %v1698
    %1700 = vdwg.mxu0
    %1701 = vmatprep.subr.mxu0 0.0
    %1702 = vmatpush1.msra.mxu0 0.0
    %1703 = vmatprep.subr.mxu0 0.0
    %1704 = vmatpush1.msra.mxu0 0.0
    %1705 = vmatprep.subr.mxu0 0.0
    %1706 = vmatpush1.msra.mxu0 0.0
    %1707 = vmatprep.subr.mxu0 0.0
    %1708 = vmatpush1.msra.mxu0 0.0
    %1709 = vmatprep.subr.mxu0 0.0
    %1710 = vmatpush1.msra.mxu0 0.0
    %1711 = vmatprep.subr.mxu0 0.0
    %1712 = vmatpush1.msra.mxu0 0.0
    %1713 = vmatprep.subr.mxu0 0.0
    %1714 = vmatpush1.msra.mxu0 0.0
    %1715 = vmatprep.subr.mxu0 0.0
    %1716 = vmatpush1.msra.mxu0 0.0
    %1717 = vmatprep.subr.mxu0 0.0
    %1718 = vmatpush1.msra.mxu0 0.0
    %1719 = vmatprep.subr.mxu0 0.0
    %1720 = vmatpush1.msra.mxu0 0.0
    %1721 = vmatprep.subr.mxu0 0.0
    %1722 = vmatpush1.msra.mxu0 0.0
    %1723 = vmatprep.subr.mxu0 0.0
    %1724 = vmatpush1.msra.mxu0 0.0
    %1725 = vmatprep.subr.mxu0 0.0
    %1726 = vmatpush1.msra.mxu0 0.0
    %1727 = vmatprep.subr.mxu0 0.0
    %1728 = vmatpush1.msra.mxu0 %v1527
    %1729 = vmatprep.subr.mxu0 0.0
    %1730 = vmatpush1.msra.mxu0 %v1550
    %1731 = vmatprep.subr.mxu0 0.0
    %1732 = vmatpush1.msra.mxu0 %v1526
    %1733 = vmatprep.subr.mxu0 0.0
    %1734 = vmatpush2.msra.mxu0 0.0
    %1735 = vmatprep.subr.mxu0 0.0
    %1736 = vmatpush2.msra.mxu0 0.0
    %1737 = vmatprep.subr.mxu0 0.0
    %1738 = vmatpush2.msra.mxu0 0.0
    %1739 = vmatprep.subr.mxu0 0.0
    %1740 = vmatpush2.msra.mxu0 0.0
    %1741 = vmatprep.subr.mxu0 0.0
    %1742 = vmatpush2.msra.mxu0 0.0
    %1743 = vmatprep.subr.mxu0 0.0
    %1744 = vmatpush2.msra.mxu0 0.0
    %1745 = vmatprep.subr.mxu0 0.0
    %1746 = vmatpush2.msra.mxu0 0.0
    %1747 = vmatprep.subr.mxu0 0.0
    %1748 = vmatpush2.msra.mxu0 0.0
    %1749 = vmatprep.subr.mxu0 0.0
    %1750 = vmatpush2.msra.mxu0 0.0
    %1751 = vmatprep.subr.mxu0 0.0
    %1752 = vmatpush2.msra.mxu0 0.0
    %1753 = vmatprep.subr.mxu0 0.0
    %1754 = vmatpush2.msra.mxu0 0.0
    %1755 = vmatprep.subr.mxu0 0.0
    %1756 = vmatpush2.msra.mxu0 0.0
    %1757 = vmatprep.subr.mxu0 0.0
    %1758 = vmatpush2.msra.mxu0 0.0
    %1759 = vmatprep.subr.mxu0 0.0
    %1760 = vmatpush2.msra.mxu0 0.0
    %1761 = vmatprep.subr.mxu0 0.0
    %1762 = vmatpush2.msra.mxu0 0.0
    %1763 = vmatprep.subr.mxu0 0.0
    %1764 = vmatpush2.msra.mxu0 0.0
    %1765 = vmatprep.mubr.f32.mxu0 0.0
    %1766 = vmatmul.mubr.f32.gmra.mxu0 %v1558
    %v1767 = vpop.f32.mrf.mxu0
    %v1768 = vadd.f32 0.0, %v1767
    %v1769 = vpop.f32.mrf.mxu0
    %1770 = vdwg.mxu0
    %v1771 = vadd.f32 %v1627, %v214
    %v1772 = vadd.f32 %v1629, %v216
    %v1773 = vmax.f32 %v1771, 0.0
    %v1774 = vmax.f32 %v1772, 0.0
    %1775 = vst [vmem:[#allocation3 + $0x60] sm:$0xff] %v1773
    %1776 = vst [vmem:[#allocation3 + $0x68] sm:$0xff] %v1774
    %v1777 = vadd.f32 %v1699, %v351
    %v1778 = vadd.f32 %v1768, %v353
    %v1779 = vmax.f32 %v1777, 0.0
    %v1780 = vmax.f32 %v1778, 0.0
    %1781 = vst [vmem:[#allocation3 + $0x70] sm:$0xff] %v1779
    %1782 = vst [vmem:[#allocation3 + $0x78] sm:$0xff] %v1780
    %v1783 = vld [vmem:[#allocation2 + $0xc0] sm:$0xff]
    %v1784 = vld [vmem:[#allocation2 + $0xc8] sm:$0xff]
    %v1785 = vld [vmem:[#allocation2 + $0xd0] sm:$0xff]
    %v1786 = vld [vmem:[#allocation2 + $0xd8] sm:$0xff]
    %v1787 = vld [vmem:[#allocation2 + $0xe0] sm:$0xff]
    %v1788 = vld [vmem:[#allocation2 + $0xe8] sm:$0xff]
    %1795 = vrot.lane.b32.xlu0 %v1783, 112
    %v1796 = vpop.permute.xlu0 %1795
    %1797 = vrot.lane.b32.xlu0 %v1784, 112
    %v1798 = vpop.permute.xlu0 %1797
    %1799 = vrot.lane.b32.xlu0 %v1785, 112
    %v1800 = vpop.permute.xlu0 %1799
    %1801 = vrot.lane.b32.xlu0 %v1786, 112
    %v1802 = vpop.permute.xlu0 %1801
    %1803 = vrot.lane.b32.xlu0 %v1787, 112
    %v1804 = vpop.permute.xlu0 %1803
    %1805 = vrot.lane.b32.xlu0 %v1788, 112
    %v1806 = vpop.permute.xlu0 %1805
    %v1807 = vsel %vm541, %v1796, %v1798
    %v1808 = vsel %vm541, %v1798, %v1800
    %v1809 = vsel %vm541, %v1800, %v1802
    %v1810 = vsel %vm541, %v1802, %v1804
    %v1811 = vsel %vm541, %v1804, %v1806
    %v1818 = vmax.f32 %v1783, %v1807
    %v1819 = vmax.f32 %v1784, %v1808
    %v1820 = vmax.f32 %v1785, %v1809
    %v1821 = vmax.f32 %v1786, %v1810
    %v1822 = vmax.f32 %v1787, %v1811
    %v1823 = vmax.f32 %v1788, %v1806
    %1824 = vrot.lane.b32.xlu0 %v1783, 96
    %v1825 = vpop.permute.xlu0 %1824
    %1826 = vrot.lane.b32.xlu0 %v1784, 96
    %v1827 = vpop.permute.xlu0 %1826
    %1828 = vrot.lane.b32.xlu0 %v1785, 96
    %v1829 = vpop.permute.xlu0 %1828
    %1830 = vrot.lane.b32.xlu0 %v1786, 96
    %v1831 = vpop.permute.xlu0 %1830
    %1832 = vrot.lane.b32.xlu0 %v1787, 96
    %v1833 = vpop.permute.xlu0 %1832
    %1834 = vrot.lane.b32.xlu0 %v1788, 96
    %v1835 = vpop.permute.xlu0 %1834
    %v1836 = vsel %vm559, %v1825, %v1827
    %v1837 = vsel %vm559, %v1827, %v1829
    %v1838 = vsel %vm559, %v1829, %v1831
    %v1839 = vsel %vm559, %v1831, %v1833
    %v1840 = vsel %vm559, %v1833, %v1835
    %v1847 = vmax.f32 %v1818, %v1836
    %v1848 = vmax.f32 %v1819, %v1837
    %v1849 = vmax.f32 %v1820, %v1838
    %v1850 = vmax.f32 %v1821, %v1839
    %v1851 = vmax.f32 %v1822, %v1840
    %v1852 = vmax.f32 %v1823, %v1835
    %v1853 = vld [vmem:[%s3] sm:$0xff]
    %1855 = vset.pattern.permute.xlu0 0
    %1856 = vperm.xlu0 %1855, %v1853
    %v1857 = vpop.permute.xlu0 %1856
    %v1859 = vmul.f32 %v1847, %v1857
    %v1860 = vmul.f32 %v1848, %v1857
    %v1861 = vmul.f32 %v1849, %v1857
    %v1862 = vmul.f32 %v1850, %v1857
    %v1863 = vmul.f32 %v1851, %v1857
    %v1864 = vmul.f32 %v1852, %v1857
    %1867 = vrot.lane.b32.xlu0 %v220, 48
    %v1868 = vpop.permute.xlu0 %1867
    %1869 = vrot.lane.b32.xlu0 %v222, 48
    %v1870 = vpop.permute.xlu0 %1869
    %vm1871 = vcmask 392192
    %v1872 = vsel %vm1871, %v1868, %v1870
    %v1876 = vadd.f32 %v1859, %v1868
    %v1877 = vadd.f32 %v1860, %v1872
    %v1878 = vadd.f32 %v1861, %v1870
    %v1879 = vmax.f32 %v1876, 0.0
    %v1880 = vmax.f32 %v1877, 0.0
    %v1881 = vmax.f32 %v1878, 0.0
    %1885 = vrot.lane.b32.xlu0 %v1879, 80
    %v1886 = vpop.permute.xlu0 %1885
    %1887 = vrot.lane.b32.xlu0 %v1880, 80
    %v1888 = vpop.permute.xlu0 %1887
    %1889 = vrot.lane.b32.xlu0 %v1881, 80
    %v1890 = vpop.permute.xlu0 %1889
    %v1891 = vsel %vm602, %v1886, %v1888
    %v1892 = vsel %vm602, %v1888, %v1890
    %1895 = vst [vmem:[#allocation3 + $0x80] sm:$0xff] %v1891
    %1896 = vst [vmem:[#allocation3 + $0x88] sm:$0xff] %v1892
    %1899 = vrot.lane.b32.xlu0 %v357, 48
    %v1900 = vpop.permute.xlu0 %1899
    %1901 = vrot.lane.b32.xlu0 %v359, 48
    %v1902 = vpop.permute.xlu0 %1901
    %v1903 = vsel %vm1871, %v1900, %v1902
    %v1907 = vadd.f32 %v1862, %v1900
    %v1908 = vadd.f32 %v1863, %v1903
    %v1909 = vadd.f32 %v1864, %v1902
    %v1910 = vmax.f32 %v1907, 0.0
    %v1911 = vmax.f32 %v1908, 0.0
    %v1912 = vmax.f32 %v1909, 0.0
    %1916 = vrot.lane.b32.xlu0 %v1910, 80
    %v1917 = vpop.permute.xlu0 %1916
    %1918 = vrot.lane.b32.xlu0 %v1911, 80
    %v1919 = vpop.permute.xlu0 %1918
    %1920 = vrot.lane.b32.xlu0 %v1912, 80
    %v1921 = vpop.permute.xlu0 %1920
    %v1922 = vsel %vm602, %v1917, %v1919
    %v1923 = vsel %vm602, %v1919, %v1921
    %1926 = vst [vmem:[#allocation3 + $0x90] sm:$0xff] %v1922
    %1927 = vst [vmem:[#allocation3 + $0x98] sm:$0xff] %v1923
    %v1928 = vadd.f32 %v190, %v226
    %v1929 = vadd.f32 %v192, %v228
    %v1930 = vadd.f32 %v327, %v363
    %v1931 = vadd.f32 %v329, %v365
    %v1932 = vmax.f32 %v1928, 0.0
    %v1933 = vmax.f32 %v1929, 0.0
    %v1934 = vmax.f32 %v1930, 0.0
    %v1935 = vmax.f32 %v1931, 0.0
    %1936 = vst [vmem:[#allocation3 + $0xa0] sm:$0xff] %v1932
    %1937 = vst [vmem:[#allocation3 + $0xa8] sm:$0xff] %v1933
    %1938 = vst [vmem:[#allocation3 + $0xb0] sm:$0xff] %v1934
    %1939 = vst [vmem:[#allocation3 + $0xb8] sm:$0xff] %v1935
    // Predicated region
    $region18: #{tpu_custom_call.1} parent=1 // pred_check
      _
    $region19: #{tpu_custom_call.1} parent=1 // pred_check_branch
      %1941 = sbr.rel (0) target = $region21
    $region20: #{tpu_custom_call.1} parent=1 // pred_region
      %s1943 = ssub.s32 3072, 3072
      %1944 = vsyncadd [#allocation4], %s1943
      %s1945 = sshll.u32 [#allocation3], 4
      %s1946 = int_to_ptr.vmem [resolvable:$true] %s1945
      %1951 = dma.vmem_to_hbm [thread:$0]  %s1946, 3072, %s4, [#allocation4], 512, 512, 32
    $region21: #{tpu_custom_call.1} parent=1 // pred_fallthru
      _
    // Predicated region
    $region22: #{tpu_custom_call.1} parent=1 // pred_check
      _
    $region23: #{tpu_custom_call.1} parent=1 // pred_check_branch
      %1953 = sbr.rel (0) target = $region25
    $region24: #{tpu_custom_call.1} parent=1 // pred_region
      %1954 = dma.done [#allocation4], 3072
    $region25: #{tpu_custom_call.1} parent=1 // pred_fallthru
      _
    %1955 = vsyncpa [#allocation4], 1

</llo_original>
